<compile_context>
chip_gen: v7x
topology: tpu7x:2x2x1
jax: 0.10.0
libtpu: 0.0.40
codegen_flags: <defaults>
</compile_context>

<pallas_src>
import math
import jax
import jax.numpy as jnp
from jax.experimental import pallas as pl
from jax.experimental.pallas import tpu as pltpu

# ----------------------------- model config ---------------------------------
B = 2              # batch
S = 8              # seq len
BS = B * S
VOCAB = 50
VOCAB_PAD = 64     # zero-padded vocab so the one-hot matmul has a clean K dim
E = 16             # embedding size (ALBERT factorized embedding)
H = 32             # hidden size
NH = 2             # attention heads
HD = H // NH       # head dim
I = 64             # intermediate (FFN) size
LAYERS = 2         # num hidden layers (weights shared, ALBERT-style)
NUM_CLASSES = 3
TYPE_VOCAB = 2
LN_EPS = 1e-12
C_PAD = 128        # lane-dense padded classifier width

# ---- packed static-weight slab layout: rows of a (WPACK_ROWS, 128) f32 array
R_WMAP = 0                        # (E, H)       embedding_hidden_mapping_in
R_WQKV = R_WMAP + E               # (H, 3H)      fused Q|K|V
R_WO   = R_WQKV + H               # (H, H)       attention output projection
R_WF   = R_WO + H                 # (H, I)       FFN in
R_WF2  = R_WF + H                 # (I, H)       FFN out
R_WCLS = R_WF2 + I                # (H, C_PAD)   classifier (zero-padded lanes)
R_WORD = R_WCLS + H               # (VOCAB_PAD, E) word embedding table
R_POS  = R_WORD + VOCAB_PAD       # (BS, E)      pos_emb tiled over batch + type_emb[0]
R_XPEN = R_POS + BS               # (BS, BS)     cross-batch -1e9 attention penalty
WPACK_ROWS = R_XPEN + BS          # 304

# ---- packed row-constant slab layout: one row each of a (CPACK_ROWS, 128) f32 array
(C_EMBG, C_EMBB, C_TDIFF, C_BMAP, C_BQKV, C_BO, C_G1, C_B1,
 C_BF, C_BF2, C_G2, C_B2, C_BCLS, C_SEL) = range(14)   # C_SEL spans B rows
CPACK_ROWS = 16

VMEM_SPEC = pl.BlockSpec(memory_space=pltpu.MemorySpace.VMEM)


# ------------------------------ in-kernel helpers ----------------------------
def _layer_norm(x, g, b):
    m = jnp.mean(x, axis=-1, keepdims=True)
    v = jnp.mean((x - m) ** 2, axis=-1, keepdims=True)
    return (x - m) * jax.lax.rsqrt(v + LN_EPS) * g + b


def _gelu_new(x):
    return 0.5 * x * (1.0 + jnp.tanh(0.7978845608028654 * (x + 0.044715 * x * x * x)))


# --------------------------- fused Pallas kernel ------------------------------
def fused_forward_kernel(ids_ref, tt_ref, am_ref, tm_ref, wpack_ref, cpack_ref, out_ref):
    f32 = jnp.float32

    # ---- unpack static slabs (static sub-slices of the two packed inputs) ----
    w_map  = wpack_ref[R_WMAP:R_WMAP + E, 0:H]
    w_qkv  = wpack_ref[R_WQKV:R_WQKV + H, 0:3 * H]
    w_o    = wpack_ref[R_WO:R_WO + H, 0:H]
    w_f    = wpack_ref[R_WF:R_WF + H, 0:I]
    w_f2   = wpack_ref[R_WF2:R_WF2 + I, 0:H]
    w_cls  = wpack_ref[R_WCLS:R_WCLS + H, 0:C_PAD]
    word_e = wpack_ref[R_WORD:R_WORD + VOCAB_PAD, 0:E]
    pos_t0 = wpack_ref[R_POS:R_POS + BS, 0:E]
    xpen   = wpack_ref[R_XPEN:R_XPEN + BS, 0:BS]

    emb_g  = cpack_ref[C_EMBG:C_EMBG + 1, 0:E]
    emb_b  = cpack_ref[C_EMBB:C_EMBB + 1, 0:E]
    t_diff = cpack_ref[C_TDIFF:C_TDIFF + 1, 0:E]
    b_map  = cpack_ref[C_BMAP:C_BMAP + 1, 0:H]
    b_qkv  = cpack_ref[C_BQKV:C_BQKV + 1, 0:3 * H]
    b_o    = cpack_ref[C_BO:C_BO + 1, 0:H]
    g1     = cpack_ref[C_G1:C_G1 + 1, 0:H]
    b1     = cpack_ref[C_B1:C_B1 + 1, 0:H]
    b_f    = cpack_ref[C_BF:C_BF + 1, 0:I]
    b_f2   = cpack_ref[C_BF2:C_BF2 + 1, 0:H]
    g2     = cpack_ref[C_G2:C_G2 + 1, 0:H]
    b2     = cpack_ref[C_B2:C_B2 + 1, 0:H]
    b_cls  = cpack_ref[C_BCLS:C_BCLS + 1, 0:C_PAD]
    sel    = cpack_ref[C_SEL:C_SEL + B, 0:BS]          # (B, BS) pooling batch selector

    # ---- embeddings: one-hot word lookup (MXU) + pos/type, LN, E->H mapping ----
    ids = ids_ref[...]                                   # (BS, 1) int32
    onehot = (jax.lax.broadcasted_iota(jnp.int32, (BS, VOCAB_PAD), 1) == ids).astype(f32)
    tt_f = tt_ref[...].astype(f32)                       # (BS, 1)
    emb = jnp.dot(onehot, word_e, preferred_element_type=f32) + pos_t0 + tt_f * t_diff
    x0 = _layer_norm(emb, emb_g, emb_b)                  # (BS, E)
    h = jnp.dot(x0, w_map, preferred_element_type=f32) + b_map          # (BS, H)

    # ---- additive attention bias: HF key-padding bias + cross-batch penalty ----
    bias_full = xpen + (1.0 - am_ref[...]) * -10000.0    # (BS, BS)

    scale = 1.0 / math.sqrt(HD)

    def layer(_, hc):
        # fused QKV: one (BS,H)x(H,3H) matmul; static per-head lane slices.
        qkv = jnp.dot(hc, w_qkv, preferred_element_type=f32) + b_qkv    # (BS, 3H)
        ctxs = []
        for hh in range(NH):                             # static head loop (NH=2)
            q = qkv[:, hh * HD:(hh + 1) * HD]
            k = qkv[:, H + hh * HD:H + (hh + 1) * HD]
            v = qkv[:, 2 * H + hh * HD:2 * H + (hh + 1) * HD]
            # block-diagonal batched attention over the whole flattened B*S axis
            s = jax.lax.dot_general(q, k, (((1,), (1,)), ((), ())),
                                    preferred_element_type=f32)          # (BS, BS)
            s = s * scale + bias_full
            s = s - jnp.max(s, axis=-1, keepdims=True)
            p = jnp.exp(s)
            p = p * pl.reciprocal(jnp.sum(p, axis=-1, keepdims=True), approx=True)
            ctxs.append(jnp.dot(p, v, preferred_element_type=f32))       # (BS, HD)
        ctx = jnp.concatenate(ctxs, axis=-1)                              # (BS, H)
        attn = jnp.dot(ctx, w_o, preferred_element_type=f32) + b_o        # single O-proj
        a = _layer_norm(hc + attn, g1, b1)
        f = _gelu_new(jnp.dot(a, w_f, preferred_element_type=f32) + b_f)
        f2 = jnp.dot(f, w_f2, preferred_element_type=f32) + b_f2
        return _layer_norm(a + f2, g2, b2)

    # ALBERT: the same VMEM-resident weights are reused for every layer.
    h = jax.lax.fori_loop(0, LAYERS, layer, h, unroll=True)

    # ---- masked mean pooling over target tokens + classifier head ------------
    pool_m = sel * tm_ref[...]                            # (B, BS)
    den = jnp.sum(pool_m, axis=1, keepdims=True)          # (B, 1)
    num = jnp.dot(pool_m, h, preferred_element_type=f32)  # (B, H)
    pooled = num / den          # exact divide; NaN on all-zero target_mask like PyTorch
    # lane-dense (B, 128) logits slab; real logits live in the first NUM_CLASSES lanes
    out_ref[...] = jnp.dot(pooled, w_cls, preferred_element_type=f32) + b_cls


# ------------------------------ parameter init --------------------------------
def init_params(key):
    ks = iter(jax.random.split(key, 32))
    nrm = lambda shp: 0.02 * jax.random.normal(next(ks), shp, jnp.float32)
    zeros = lambda shp: jnp.zeros(shp, jnp.float32)
    ones = lambda shp: jnp.ones(shp, jnp.float32)
    return {
        # embeddings
        "word_emb": nrm((VOCAB, E)),
        "pos_emb": nrm((S, E)),
        "type_emb": nrm((TYPE_VOCAB, E)),
        "emb_ln_g": ones((E,)),
        "emb_ln_b": zeros((E,)),
        # embedding_hidden_mapping_in
        "w_map": nrm((E, H)),
        "b_map": zeros((1, H)),
        # shared ALBERT layer
        "wq": nrm((H, H)), "bq": zeros((1, H)),
        "wk": nrm((H, H)), "bk": zeros((1, H)),
        "wv": nrm((H, H)), "bv": zeros((1, H)),
        "wo": nrm((H, H)), "bo": zeros((1, H)),
        "ln1_g": ones((1, H)), "ln1_b": zeros((1, H)),
        "wf": nrm((H, I)), "bf": zeros((1, I)),
        "wf2": nrm((I, H)), "bf2": zeros((1, H)),
        "ln2_g": ones((1, H)), "ln2_b": zeros((1, H)),
        # classifier head (nn.Linear(hidden_size, num_classes))
        "w_cls": nrm((H, NUM_CLASSES)),
        "b_cls": zeros((1, NUM_CLASSES)),
    }


# ------------------ one-time packing of static kernel constants ----------------
def pack_params(p):
    f32 = jnp.float32
    w_qkv = jnp.concatenate([p["wq"], p["wk"], p["wv"]], axis=1)            # (H, 3H)
    b_qkv = jnp.concatenate([p["bq"], p["bk"], p["bv"]], axis=1)            # (1, 3H)
    pos_t0 = jnp.tile(p["pos_emb"], (B, 1)) + p["type_emb"][0:1]            # (BS, E)
    t_diff = p["type_emb"][1:2] - p["type_emb"][0:1]                        # (1, E)
    word_e = jnp.zeros((VOCAB_PAD, E), f32).at[:VOCAB].set(p["word_emb"])
    w_cls = jnp.zeros((H, C_PAD), f32).at[:, :NUM_CLASSES].set(p["w_cls"])
    b_cls = jnp.zeros((C_PAD,), f32).at[:NUM_CLASSES].set(p["b_cls"].reshape(-1))
    batch_id = jnp.arange(BS) // S
    xpen = jnp.where(batch_id[:, None] == batch_id[None, :], 0.0, -1e9).astype(f32)
    sel = (batch_id[None, :] == jnp.arange(B)[:, None]).astype(f32)         # (B, BS)

    def put(slab, r0, mat):
        r, c = mat.shape
        return slab.at[r0:r0 + r, 0:c].set(mat)

    wpack = jnp.zeros((WPACK_ROWS, 128), f32)
    wpack = put(wpack, R_WMAP, p["w_map"])
    wpack = put(wpack, R_WQKV, w_qkv)
    wpack = put(wpack, R_WO, p["wo"])
    wpack = put(wpack, R_WF, p["wf"])
    wpack = put(wpack, R_WF2, p["wf2"])
    wpack = put(wpack, R_WCLS, w_cls)
    wpack = put(wpack, R_WORD, word_e)
    wpack = put(wpack, R_POS, pos_t0)
    wpack = put(wpack, R_XPEN, xpen)

    def row(slab, r0, vec):
        v = vec.reshape(-1)
        return slab.at[r0, 0:v.shape[0]].set(v)

    cpack = jnp.zeros((CPACK_ROWS, 128), f32)
    cpack = row(cpack, C_EMBG, p["emb_ln_g"])
    cpack = row(cpack, C_EMBB, p["emb_ln_b"])
    cpack = row(cpack, C_TDIFF, t_diff)
    cpack = row(cpack, C_BMAP, p["b_map"])
    cpack = row(cpack, C_BQKV, b_qkv)
    cpack = row(cpack, C_BO, p["bo"])
    cpack = row(cpack, C_G1, p["ln1_g"])
    cpack = row(cpack, C_B1, p["ln1_b"])
    cpack = row(cpack, C_BF, p["bf"])
    cpack = row(cpack, C_BF2, p["bf2"])
    cpack = row(cpack, C_G2, p["ln2_g"])
    cpack = row(cpack, C_B2, p["ln2_b"])
    cpack = row(cpack, C_BCLS, b_cls)
    cpack = put(cpack, C_SEL, sel)
    return wpack, cpack


# ------------------------------ forward pass ----------------------------------
def beike_forward(wpack, cpack, input_ids, attention_mask, token_type_ids, target_mask):
    # Per-call wrapper work is only 4 reshapes/casts; everything else is in the kernel.
    ids_col = input_ids.reshape(BS, 1).astype(jnp.int32)
    tt_col = token_type_ids.reshape(BS, 1).astype(jnp.int32)
    am_row = attention_mask.reshape(1, BS).astype(jnp.float32)
    tm_row = target_mask.reshape(1, BS).astype(jnp.float32)

    logits_pad = pl.pallas_call(
        fused_forward_kernel,
        out_shape=jax.ShapeDtypeStruct((B, C_PAD), jnp.float32),
        in_specs=[VMEM_SPEC] * 6,
        out_specs=VMEM_SPEC,
    )(ids_col, tt_col, am_row, tm_row, wpack, cpack)

    return logits_pad[:, :NUM_CLASSES]


# ---------------------------------- main ---------------------------------------
if __name__ == "__main__":
    key = jax.random.PRNGKey(0)
    kp, kid, ktt = jax.random.split(key, 3)

    params = init_params(kp)
    wpack, cpack = pack_params(params)     # one-time packing, off the per-call path

    input_ids = jax.random.randint(kid, (B, S), 0, VOCAB, dtype=jnp.int32)
    token_type_ids = jax.random.randint(ktt, (B, S), 0, TYPE_VOCAB, dtype=jnp.int32)
    # last token of each sequence is padding
    attention_mask = jnp.concatenate(
        [jnp.ones((B, S - 1), jnp.float32), jnp.zeros((B, 1), jnp.float32)], axis=1
    )
    # target span = tokens 1..3
    target_mask = jnp.zeros((B, S), jnp.float32).at[:, 1:4].set(1.0)

    fwd = jax.jit(beike_forward)
    logits = fwd(wpack, cpack, input_ids, attention_mask, token_type_ids, target_mask)
    jax.block_until_ready(logits)
    assert logits.shape == (B, NUM_CLASSES) and bool(jnp.all(jnp.isfinite(logits)))
    print("KERNEL_OK")
</pallas_src>

<mosaic_0001>
module attributes {stable_mosaic.version = 11 : i64} {
  func.func @fused_forward_kernel(%arg0: memref<16x1xi32, #tpu.memory_space<vmem>>, %arg1: memref<16x1xi32, #tpu.memory_space<vmem>>, %arg2: memref<1x16xf32, #tpu.memory_space<vmem>>, %arg3: memref<1x16xf32, #tpu.memory_space<vmem>>, %arg4: memref<304x128xf32, #tpu.memory_space<vmem>>, %arg5: memref<16x128xf32, #tpu.memory_space<vmem>>, %arg6: memref<2x128xf32, #tpu.memory_space<vmem>>) attributes {dimension_semantics = [], scalar_prefetch = 0 : i64, scratch_operands = 0 : i64, tpu.core_type = #tpu.core_type<tc>} {
    %c0 = arith.constant 0 : index
    %c0_0 = arith.constant 0 : index
    %0 = vector.load %arg4[%c0, %c0_0] : memref<304x128xf32, #tpu.memory_space<vmem>>, vector<16x32xf32>
    %c16 = arith.constant 16 : index
    %c0_1 = arith.constant 0 : index
    %1 = vector.load %arg4[%c16, %c0_1] : memref<304x128xf32, #tpu.memory_space<vmem>>, vector<32x96xf32>
    %c48 = arith.constant 48 : index
    %c0_2 = arith.constant 0 : index
    %2 = vector.load %arg4[%c48, %c0_2] : memref<304x128xf32, #tpu.memory_space<vmem>>, vector<32x32xf32>
    %c80 = arith.constant 80 : index
    %c0_3 = arith.constant 0 : index
    %3 = vector.load %arg4[%c80, %c0_3] : memref<304x128xf32, #tpu.memory_space<vmem>>, vector<32x64xf32>
    %c112 = arith.constant 112 : index
    %c0_4 = arith.constant 0 : index
    %4 = vector.load %arg4[%c112, %c0_4] : memref<304x128xf32, #tpu.memory_space<vmem>>, vector<64x32xf32>
    %c176 = arith.constant 176 : index
    %c0_5 = arith.constant 0 : index
    %5 = vector.load %arg4[%c176, %c0_5] : memref<304x128xf32, #tpu.memory_space<vmem>>, vector<32x128xf32>
    %c208 = arith.constant 208 : index
    %c0_6 = arith.constant 0 : index
    %6 = vector.load %arg4[%c208, %c0_6] : memref<304x128xf32, #tpu.memory_space<vmem>>, vector<64x16xf32>
    %c272 = arith.constant 272 : index
    %c0_7 = arith.constant 0 : index
    %7 = vector.load %arg4[%c272, %c0_7] : memref<304x128xf32, #tpu.memory_space<vmem>>, vector<16x16xf32>
    %c288 = arith.constant 288 : index
    %c0_8 = arith.constant 0 : index
    %8 = vector.load %arg4[%c288, %c0_8] : memref<304x128xf32, #tpu.memory_space<vmem>>, vector<16x16xf32>
    %c0_9 = arith.constant 0 : index
    %c0_10 = arith.constant 0 : index
    %9 = vector.load %arg5[%c0_9, %c0_10] : memref<16x128xf32, #tpu.memory_space<vmem>>, vector<1x16xf32>
    %c1 = arith.constant 1 : index
    %c0_11 = arith.constant 0 : index
    %10 = vector.load %arg5[%c1, %c0_11] : memref<16x128xf32, #tpu.memory_space<vmem>>, vector<1x16xf32>
    %c2 = arith.constant 2 : index
    %c0_12 = arith.constant 0 : index
    %11 = vector.load %arg5[%c2, %c0_12] : memref<16x128xf32, #tpu.memory_space<vmem>>, vector<1x16xf32>
    %c3 = arith.constant 3 : index
    %c0_13 = arith.constant 0 : index
    %12 = vector.load %arg5[%c3, %c0_13] : memref<16x128xf32, #tpu.memory_space<vmem>>, vector<1x32xf32>
    %c4 = arith.constant 4 : index
    %c0_14 = arith.constant 0 : index
    %13 = vector.load %arg5[%c4, %c0_14] : memref<16x128xf32, #tpu.memory_space<vmem>>, vector<1x96xf32>
    %c5 = arith.constant 5 : index
    %c0_15 = arith.constant 0 : index
    %14 = vector.load %arg5[%c5, %c0_15] : memref<16x128xf32, #tpu.memory_space<vmem>>, vector<1x32xf32>
    %c6 = arith.constant 6 : index
    %c0_16 = arith.constant 0 : index
    %15 = vector.load %arg5[%c6, %c0_16] : memref<16x128xf32, #tpu.memory_space<vmem>>, vector<1x32xf32>
    %c7 = arith.constant 7 : index
    %c0_17 = arith.constant 0 : index
    %16 = vector.load %arg5[%c7, %c0_17] : memref<16x128xf32, #tpu.memory_space<vmem>>, vector<1x32xf32>
    %c8 = arith.constant 8 : index
    %c0_18 = arith.constant 0 : index
    %17 = vector.load %arg5[%c8, %c0_18] : memref<16x128xf32, #tpu.memory_space<vmem>>, vector<1x64xf32>
    %c9 = arith.constant 9 : index
    %c0_19 = arith.constant 0 : index
    %18 = vector.load %arg5[%c9, %c0_19] : memref<16x128xf32, #tpu.memory_space<vmem>>, vector<1x32xf32>
    %c10 = arith.constant 10 : index
    %c0_20 = arith.constant 0 : index
    %19 = vector.load %arg5[%c10, %c0_20] : memref<16x128xf32, #tpu.memory_space<vmem>>, vector<1x32xf32>
    %c11 = arith.constant 11 : index
    %c0_21 = arith.constant 0 : index
    %20 = vector.load %arg5[%c11, %c0_21] : memref<16x128xf32, #tpu.memory_space<vmem>>, vector<1x32xf32>
    %c12 = arith.constant 12 : index
    %c0_22 = arith.constant 0 : index
    %21 = vector.load %arg5[%c12, %c0_22] : memref<16x128xf32, #tpu.memory_space<vmem>>, vector<1x128xf32>
    %c13 = arith.constant 13 : index
    %c0_23 = arith.constant 0 : index
    %22 = vector.load %arg5[%c13, %c0_23] : memref<16x128xf32, #tpu.memory_space<vmem>>, vector<2x16xf32>
    %c0_24 = arith.constant 0 : index
    %c0_25 = arith.constant 0 : index
    %23 = vector.load %arg0[%c0_24, %c0_25] : memref<16x1xi32, #tpu.memory_space<vmem>>, vector<16x1xi32>
    %24 = tpu.iota {dimensions = array<i32: 1>} : vector<16x64xi32>
    %25 = vector.broadcast %23 : vector<16x1xi32> to vector<16x64xi32>
    %26 = arith.cmpi eq, %24, %25 : vector<16x64xi32>
    %27 = arith.extui %26 : vector<16x64xi1> to vector<16x64xi32>
    %28 = arith.sitofp %27 : vector<16x64xi32> to vector<16x64xf32>
    %c0_26 = arith.constant 0 : index
    %c0_27 = arith.constant 0 : index
    %29 = vector.load %arg1[%c0_26, %c0_27] : memref<16x1xi32, #tpu.memory_space<vmem>>, vector<16x1xi32>
    %30 = arith.sitofp %29 : vector<16x1xi32> to vector<16x1xf32>
    %cst = arith.constant dense<0.000000e+00> : vector<16x16xf32>
    %31 = tpu.matmul %28, %6, %cst {dimension_numbers = #tpu.dot_dimension_numbers<[1], [0], [0], [1], [0, 0, 1, 1], [], []>} : vector<16x64xf32>, vector<64x16xf32>, vector<16x16xf32> -> vector<16x16xf32>
    %32 = arith.addf %31, %7 : vector<16x16xf32>
    %33 = vector.broadcast %30 : vector<16x1xf32> to vector<16x16xf32>
    %34 = vector.broadcast %11 : vector<1x16xf32> to vector<16x16xf32>
    %35 = arith.mulf %33, %34 : vector<16x16xf32>
    %36 = arith.addf %32, %35 : vector<16x16xf32>
    %cst_28 = arith.constant dense<0.000000e+00> : vector<16xf32>
    %37 = vector.multi_reduction <add>, %36, %cst_28 [1] : vector<16x16xf32> to vector<16xf32>
    %38 = vector.shape_cast %37 : vector<16xf32> to vector<16x1xf32>
    %cst_29 = arith.constant 1.600000e+01 : f32
    %39 = vector.broadcast %cst_29 : f32 to vector<16x1xf32>
    %40 = arith.divf %38, %39 : vector<16x1xf32>
    %41 = vector.broadcast %40 : vector<16x1xf32> to vector<16x16xf32>
    %42 = arith.subf %36, %41 : vector<16x16xf32>
    %43 = arith.mulf %42, %42 : vector<16x16xf32>
    %cst_30 = arith.constant dense<0.000000e+00> : vector<16xf32>
    %44 = vector.multi_reduction <add>, %43, %cst_30 [1] : vector<16x16xf32> to vector<16xf32>
    %45 = vector.shape_cast %44 : vector<16xf32> to vector<16x1xf32>
    %cst_31 = arith.constant 1.600000e+01 : f32
    %46 = vector.broadcast %cst_31 : f32 to vector<16x1xf32>
    %47 = arith.divf %45, %46 : vector<16x1xf32>
    %48 = vector.broadcast %40 : vector<16x1xf32> to vector<16x16xf32>
    %49 = arith.subf %36, %48 : vector<16x16xf32>
    %cst_32 = arith.constant 9.99999996E-13 : f32
    %50 = vector.broadcast %cst_32 : f32 to vector<16x1xf32>
    %51 = arith.addf %47, %50 : vector<16x1xf32>
    %52 = math.rsqrt %51 : vector<16x1xf32>
    %53 = vector.broadcast %52 : vector<16x1xf32> to vector<16x16xf32>
    %54 = arith.mulf %49, %53 : vector<16x16xf32>
    %55 = vector.broadcast %9 : vector<1x16xf32> to vector<16x16xf32>
    %56 = arith.mulf %54, %55 : vector<16x16xf32>
    %57 = vector.broadcast %10 : vector<1x16xf32> to vector<16x16xf32>
    %58 = arith.addf %56, %57 : vector<16x16xf32>
    %cst_33 = arith.constant dense<0.000000e+00> : vector<16x32xf32>
    %59 = tpu.matmul %58, %0, %cst_33 {dimension_numbers = #tpu.dot_dimension_numbers<[1], [0], [0], [1], [0, 0, 1, 1], [], []>} : vector<16x16xf32>, vector<16x32xf32>, vector<16x32xf32> -> vector<16x32xf32>
    %60 = vector.broadcast %12 : vector<1x32xf32> to vector<16x32xf32>
    %61 = arith.addf %59, %60 : vector<16x32xf32>
    %c0_34 = arith.constant 0 : index
    %c0_35 = arith.constant 0 : index
    %62 = vector.load %arg2[%c0_34, %c0_35] : memref<1x16xf32, #tpu.memory_space<vmem>>, vector<1x16xf32>
    %cst_36 = arith.constant 1.000000e+00 : f32
    %63 = vector.broadcast %cst_36 : f32 to vector<1x16xf32>
    %64 = arith.subf %63, %62 : vector<1x16xf32>
    %cst_37 = arith.constant -1.000000e+04 : f32
    %65 = vector.broadcast %cst_37 : f32 to vector<1x16xf32>
    %66 = arith.mulf %64, %65 : vector<1x16xf32>
    %67 = vector.broadcast %66 : vector<1x16xf32> to vector<16x16xf32>
    %68 = arith.addf %8, %67 : vector<16x16xf32>
    %c0_i32 = arith.constant 0 : i32
    %cst_38 = arith.constant dense<0.000000e+00> : vector<16x96xf32>
    %69 = tpu.matmul %61, %1, %cst_38 {dimension_numbers = #tpu.dot_dimension_numbers<[1], [0], [0], [1], [0, 0, 1, 1], [], []>} : vector<16x32xf32>, vector<32x96xf32>, vector<16x96xf32> -> vector<16x96xf32>
    %70 = vector.broadcast %13 : vector<1x96xf32> to vector<16x96xf32>
    %71 = arith.addf %69, %70 : vector<16x96xf32>
    %72 = vector.extract_strided_slice %71 {offsets = [0, 0], sizes = [16, 16], strides = [1, 1]} : vector<16x96xf32> to vector<16x16xf32>
    %73 = vector.extract_strided_slice %71 {offsets = [0, 32], sizes = [16, 16], strides = [1, 1]} : vector<16x96xf32> to vector<16x16xf32>
    %74 = vector.extract_strided_slice %71 {offsets = [0, 64], sizes = [16, 16], strides = [1, 1]} : vector<16x96xf32> to vector<16x16xf32>
    %cst_39 = arith.constant dense<0.000000e+00> : vector<16x16xf32>
    %75 = tpu.matmul %72, %73, %cst_39 {dimension_numbers = #tpu.dot_dimension_numbers<[1], [1], [0], [0], [0, 0, 1, 0], [], []>} : vector<16x16xf32>, vector<16x16xf32>, vector<16x16xf32> -> vector<16x16xf32>
    %cst_40 = arith.constant 2.500000e-01 : f32
    %76 = vector.broadcast %cst_40 : f32 to vector<16x16xf32>
    %77 = arith.mulf %75, %76 : vector<16x16xf32>
    %78 = arith.addf %77, %68 : vector<16x16xf32>
    %cst_41 = arith.constant dense<0xFF800000> : vector<16xf32>
    %79 = vector.multi_reduction <maximumf>, %78, %cst_41 [1] : vector<16x16xf32> to vector<16xf32>
    %80 = vector.shape_cast %79 : vector<16xf32> to vector<16x1xf32>
    %81 = vector.broadcast %80 : vector<16x1xf32> to vector<16x16xf32>
    %82 = arith.subf %78, %81 : vector<16x16xf32>
    %83 = math.exp %82 : vector<16x16xf32>
    %cst_42 = arith.constant dense<0.000000e+00> : vector<16xf32>
    %84 = vector.multi_reduction <add>, %83, %cst_42 [1] : vector<16x16xf32> to vector<16xf32>
    %85 = vector.shape_cast %84 : vector<16xf32> to vector<16x1xf32>
    %86 = tpu.reciprocal %85 {approx = true} : vector<16x1xf32> -> vector<16x1xf32>
    %87 = vector.broadcast %86 : vector<16x1xf32> to vector<16x16xf32>
    %88 = arith.mulf %83, %87 : vector<16x16xf32>
    %cst_43 = arith.constant dense<0.000000e+00> : vector<16x16xf32>
    %89 = tpu.matmul %88, %74, %cst_43 {dimension_numbers = #tpu.dot_dimension_numbers<[1], [0], [0], [1], [0, 0, 1, 1], [], []>} : vector<16x16xf32>, vector<16x16xf32>, vector<16x16xf32> -> vector<16x16xf32>
    %90 = vector.extract_strided_slice %71 {offsets = [0, 16], sizes = [16, 16], strides = [1, 1]} : vector<16x96xf32> to vector<16x16xf32>
    %91 = vector.extract_strided_slice %71 {offsets = [0, 48], sizes = [16, 16], strides = [1, 1]} : vector<16x96xf32> to vector<16x16xf32>
    %92 = vector.extract_strided_slice %71 {offsets = [0, 80], sizes = [16, 16], strides = [1, 1]} : vector<16x96xf32> to vector<16x16xf32>
    %cst_44 = arith.constant dense<0.000000e+00> : vector<16x16xf32>
    %93 = tpu.matmul %90, %91, %cst_44 {dimension_numbers = #tpu.dot_dimension_numbers<[1], [1], [0], [0], [0, 0, 1, 0], [], []>} : vector<16x16xf32>, vector<16x16xf32>, vector<16x16xf32> -> vector<16x16xf32>
    %cst_45 = arith.constant 2.500000e-01 : f32
    %94 = vector.broadcast %cst_45 : f32 to vector<16x16xf32>
    %95 = arith.mulf %93, %94 : vector<16x16xf32>
    %96 = arith.addf %95, %68 : vector<16x16xf32>
    %cst_46 = arith.constant dense<0xFF800000> : vector<16xf32>
    %97 = vector.multi_reduction <maximumf>, %96, %cst_46 [1] : vector<16x16xf32> to vector<16xf32>
    %98 = vector.shape_cast %97 : vector<16xf32> to vector<16x1xf32>
    %99 = vector.broadcast %98 : vector<16x1xf32> to vector<16x16xf32>
    %100 = arith.subf %96, %99 : vector<16x16xf32>
    %101 = math.exp %100 : vector<16x16xf32>
    %cst_47 = arith.constant dense<0.000000e+00> : vector<16xf32>
    %102 = vector.multi_reduction <add>, %101, %cst_47 [1] : vector<16x16xf32> to vector<16xf32>
    %103 = vector.shape_cast %102 : vector<16xf32> to vector<16x1xf32>
    %104 = tpu.reciprocal %103 {approx = true} : vector<16x1xf32> -> vector<16x1xf32>
    %105 = vector.broadcast %104 : vector<16x1xf32> to vector<16x16xf32>
    %106 = arith.mulf %101, %105 : vector<16x16xf32>
    %cst_48 = arith.constant dense<0.000000e+00> : vector<16x16xf32>
    %107 = tpu.matmul %106, %92, %cst_48 {dimension_numbers = #tpu.dot_dimension_numbers<[1], [0], [0], [1], [0, 0, 1, 1], [], []>} : vector<16x16xf32>, vector<16x16xf32>, vector<16x16xf32> -> vector<16x16xf32>
    %108 = tpu.concatenate %89, %107 in 1 : vector<16x16xf32>, vector<16x16xf32> -> vector<16x32xf32>
    %cst_49 = arith.constant dense<0.000000e+00> : vector<16x32xf32>
    %109 = tpu.matmul %108, %2, %cst_49 {dimension_numbers = #tpu.dot_dimension_numbers<[1], [0], [0], [1], [0, 0, 1, 1], [], []>} : vector<16x32xf32>, vector<32x32xf32>, vector<16x32xf32> -> vector<16x32xf32>
    %110 = vector.broadcast %14 : vector<1x32xf32> to vector<16x32xf32>
    %111 = arith.addf %109, %110 : vector<16x32xf32>
    %112 = arith.addf %61, %111 : vector<16x32xf32>
    %cst_50 = arith.constant dense<0.000000e+00> : vector<16xf32>
    %113 = vector.multi_reduction <add>, %112, %cst_50 [1] : vector<16x32xf32> to vector<16xf32>
    %114 = vector.shape_cast %113 : vector<16xf32> to vector<16x1xf32>
    %cst_51 = arith.constant 3.200000e+01 : f32
    %115 = vector.broadcast %cst_51 : f32 to vector<16x1xf32>
    %116 = arith.divf %114, %115 : vector<16x1xf32>
    %117 = vector.broadcast %116 : vector<16x1xf32> to vector<16x32xf32>
    %118 = arith.subf %112, %117 : vector<16x32xf32>
    %119 = arith.mulf %118, %118 : vector<16x32xf32>
    %cst_52 = arith.constant dense<0.000000e+00> : vector<16xf32>
    %120 = vector.multi_reduction <add>, %119, %cst_52 [1] : vector<16x32xf32> to vector<16xf32>
    %121 = vector.shape_cast %120 : vector<16xf32> to vector<16x1xf32>
    %cst_53 = arith.constant 3.200000e+01 : f32
    %122 = vector.broadcast %cst_53 : f32 to vector<16x1xf32>
    %123 = arith.divf %121, %122 : vector<16x1xf32>
    %124 = vector.broadcast %116 : vector<16x1xf32> to vector<16x32xf32>
    %125 = arith.subf %112, %124 : vector<16x32xf32>
    %cst_54 = arith.constant 9.99999996E-13 : f32
    %126 = vector.broadcast %cst_54 : f32 to vector<16x1xf32>
    %127 = arith.addf %123, %126 : vector<16x1xf32>
    %128 = math.rsqrt %127 : vector<16x1xf32>
    %129 = vector.broadcast %128 : vector<16x1xf32> to vector<16x32xf32>
    %130 = arith.mulf %125, %129 : vector<16x32xf32>
    %131 = vector.broadcast %15 : vector<1x32xf32> to vector<16x32xf32>
    %132 = arith.mulf %130, %131 : vector<16x32xf32>
    %133 = vector.broadcast %16 : vector<1x32xf32> to vector<16x32xf32>
    %134 = arith.addf %132, %133 : vector<16x32xf32>
    %cst_55 = arith.constant dense<0.000000e+00> : vector<16x64xf32>
    %135 = tpu.matmul %134, %3, %cst_55 {dimension_numbers = #tpu.dot_dimension_numbers<[1], [0], [0], [1], [0, 0, 1, 1], [], []>} : vector<16x32xf32>, vector<32x64xf32>, vector<16x64xf32> -> vector<16x64xf32>
    %136 = vector.broadcast %17 : vector<1x64xf32> to vector<16x64xf32>
    %137 = arith.addf %135, %136 : vector<16x64xf32>
    %cst_56 = arith.constant 5.000000e-01 : f32
    %138 = vector.broadcast %cst_56 : f32 to vector<16x64xf32>
    %139 = arith.mulf %138, %137 : vector<16x64xf32>
    %cst_57 = arith.constant 4.471500e-02 : f32
    %140 = vector.broadcast %cst_57 : f32 to vector<16x64xf32>
    %141 = arith.mulf %140, %137 : vector<16x64xf32>
    %142 = arith.mulf %141, %137 : vector<16x64xf32>
    %143 = arith.mulf %142, %137 : vector<16x64xf32>
    %144 = arith.addf %137, %143 : vector<16x64xf32>
    %cst_58 = arith.constant 0.797884583 : f32
    %145 = vector.broadcast %cst_58 : f32 to vector<16x64xf32>
    %146 = arith.mulf %145, %144 : vector<16x64xf32>
    %147 = math.tanh %146 : vector<16x64xf32>
    %cst_59 = arith.constant 1.000000e+00 : f32
    %148 = vector.broadcast %cst_59 : f32 to vector<16x64xf32>
    %149 = arith.addf %148, %147 : vector<16x64xf32>
    %150 = arith.mulf %139, %149 : vector<16x64xf32>
    %cst_60 = arith.constant dense<0.000000e+00> : vector<16x32xf32>
    %151 = tpu.matmul %150, %4, %cst_60 {dimension_numbers = #tpu.dot_dimension_numbers<[1], [0], [0], [1], [0, 0, 1, 1], [], []>} : vector<16x64xf32>, vector<64x32xf32>, vector<16x32xf32> -> vector<16x32xf32>
    %152 = vector.broadcast %18 : vector<1x32xf32> to vector<16x32xf32>
    %153 = arith.addf %151, %152 : vector<16x32xf32>
    %154 = arith.addf %134, %153 : vector<16x32xf32>
    %cst_61 = arith.constant dense<0.000000e+00> : vector<16xf32>
    %155 = vector.multi_reduction <add>, %154, %cst_61 [1] : vector<16x32xf32> to vector<16xf32>
    %156 = vector.shape_cast %155 : vector<16xf32> to vector<16x1xf32>
    %cst_62 = arith.constant 3.200000e+01 : f32
    %157 = vector.broadcast %cst_62 : f32 to vector<16x1xf32>
    %158 = arith.divf %156, %157 : vector<16x1xf32>
    %159 = vector.broadcast %158 : vector<16x1xf32> to vector<16x32xf32>
    %160 = arith.subf %154, %159 : vector<16x32xf32>
    %161 = arith.mulf %160, %160 : vector<16x32xf32>
    %cst_63 = arith.constant dense<0.000000e+00> : vector<16xf32>
    %162 = vector.multi_reduction <add>, %161, %cst_63 [1] : vector<16x32xf32> to vector<16xf32>
    %163 = vector.shape_cast %162 : vector<16xf32> to vector<16x1xf32>
    %cst_64 = arith.constant 3.200000e+01 : f32
    %164 = vector.broadcast %cst_64 : f32 to vector<16x1xf32>
    %165 = arith.divf %163, %164 : vector<16x1xf32>
    %166 = vector.broadcast %158 : vector<16x1xf32> to vector<16x32xf32>
    %167 = arith.subf %154, %166 : vector<16x32xf32>
    %cst_65 = arith.constant 9.99999996E-13 : f32
    %168 = vector.broadcast %cst_65 : f32 to vector<16x1xf32>
    %169 = arith.addf %165, %168 : vector<16x1xf32>
    %170 = math.rsqrt %169 : vector<16x1xf32>
    %171 = vector.broadcast %170 : vector<16x1xf32> to vector<16x32xf32>
    %172 = arith.mulf %167, %171 : vector<16x32xf32>
    %173 = vector.broadcast %19 : vector<1x32xf32> to vector<16x32xf32>
    %174 = arith.mulf %172, %173 : vector<16x32xf32>
    %175 = vector.broadcast %20 : vector<1x32xf32> to vector<16x32xf32>
    %176 = arith.addf %174, %175 : vector<16x32xf32>
    %c1_i32 = arith.constant 1 : i32
    %cst_66 = arith.constant dense<0.000000e+00> : vector<16x96xf32>
    %177 = tpu.matmul %176, %1, %cst_66 {dimension_numbers = #tpu.dot_dimension_numbers<[1], [0], [0], [1], [0, 0, 1, 1], [], []>} : vector<16x32xf32>, vector<32x96xf32>, vector<16x96xf32> -> vector<16x96xf32>
    %178 = vector.broadcast %13 : vector<1x96xf32> to vector<16x96xf32>
    %179 = arith.addf %177, %178 : vector<16x96xf32>
    %180 = vector.extract_strided_slice %179 {offsets = [0, 0], sizes = [16, 16], strides = [1, 1]} : vector<16x96xf32> to vector<16x16xf32>
    %181 = vector.extract_strided_slice %179 {offsets = [0, 32], sizes = [16, 16], strides = [1, 1]} : vector<16x96xf32> to vector<16x16xf32>
    %182 = vector.extract_strided_slice %179 {offsets = [0, 64], sizes = [16, 16], strides = [1, 1]} : vector<16x96xf32> to vector<16x16xf32>
    %cst_67 = arith.constant dense<0.000000e+00> : vector<16x16xf32>
    %183 = tpu.matmul %180, %181, %cst_67 {dimension_numbers = #tpu.dot_dimension_numbers<[1], [1], [0], [0], [0, 0, 1, 0], [], []>} : vector<16x16xf32>, vector<16x16xf32>, vector<16x16xf32> -> vector<16x16xf32>
    %cst_68 = arith.constant 2.500000e-01 : f32
    %184 = vector.broadcast %cst_68 : f32 to vector<16x16xf32>
    %185 = arith.mulf %183, %184 : vector<16x16xf32>
    %186 = arith.addf %185, %68 : vector<16x16xf32>
    %cst_69 = arith.constant dense<0xFF800000> : vector<16xf32>
    %187 = vector.multi_reduction <maximumf>, %186, %cst_69 [1] : vector<16x16xf32> to vector<16xf32>
    %188 = vector.shape_cast %187 : vector<16xf32> to vector<16x1xf32>
    %189 = vector.broadcast %188 : vector<16x1xf32> to vector<16x16xf32>
    %190 = arith.subf %186, %189 : vector<16x16xf32>
    %191 = math.exp %190 : vector<16x16xf32>
    %cst_70 = arith.constant dense<0.000000e+00> : vector<16xf32>
    %192 = vector.multi_reduction <add>, %191, %cst_70 [1] : vector<16x16xf32> to vector<16xf32>
    %193 = vector.shape_cast %192 : vector<16xf32> to vector<16x1xf32>
    %194 = tpu.reciprocal %193 {approx = true} : vector<16x1xf32> -> vector<16x1xf32>
    %195 = vector.broadcast %194 : vector<16x1xf32> to vector<16x16xf32>
    %196 = arith.mulf %191, %195 : vector<16x16xf32>
    %cst_71 = arith.constant dense<0.000000e+00> : vector<16x16xf32>
    %197 = tpu.matmul %196, %182, %cst_71 {dimension_numbers = #tpu.dot_dimension_numbers<[1], [0], [0], [1], [0, 0, 1, 1], [], []>} : vector<16x16xf32>, vector<16x16xf32>, vector<16x16xf32> -> vector<16x16xf32>
    %198 = vector.extract_strided_slice %179 {offsets = [0, 16], sizes = [16, 16], strides = [1, 1]} : vector<16x96xf32> to vector<16x16xf32>
    %199 = vector.extract_strided_slice %179 {offsets = [0, 48], sizes = [16, 16], strides = [1, 1]} : vector<16x96xf32> to vector<16x16xf32>
    %200 = vector.extract_strided_slice %179 {offsets = [0, 80], sizes = [16, 16], strides = [1, 1]} : vector<16x96xf32> to vector<16x16xf32>
    %cst_72 = arith.constant dense<0.000000e+00> : vector<16x16xf32>
    %201 = tpu.matmul %198, %199, %cst_72 {dimension_numbers = #tpu.dot_dimension_numbers<[1], [1], [0], [0], [0, 0, 1, 0], [], []>} : vector<16x16xf32>, vector<16x16xf32>, vector<16x16xf32> -> vector<16x16xf32>
    %cst_73 = arith.constant 2.500000e-01 : f32
    %202 = vector.broadcast %cst_73 : f32 to vector<16x16xf32>
    %203 = arith.mulf %201, %202 : vector<16x16xf32>
    %204 = arith.addf %203, %68 : vector<16x16xf32>
    %cst_74 = arith.constant dense<0xFF800000> : vector<16xf32>
    %205 = vector.multi_reduction <maximumf>, %204, %cst_74 [1] : vector<16x16xf32> to vector<16xf32>
    %206 = vector.shape_cast %205 : vector<16xf32> to vector<16x1xf32>
    %207 = vector.broadcast %206 : vector<16x1xf32> to vector<16x16xf32>
    %208 = arith.subf %204, %207 : vector<16x16xf32>
    %209 = math.exp %208 : vector<16x16xf32>
    %cst_75 = arith.constant dense<0.000000e+00> : vector<16xf32>
    %210 = vector.multi_reduction <add>, %209, %cst_75 [1] : vector<16x16xf32> to vector<16xf32>
    %211 = vector.shape_cast %210 : vector<16xf32> to vector<16x1xf32>
    %212 = tpu.reciprocal %211 {approx = true} : vector<16x1xf32> -> vector<16x1xf32>
    %213 = vector.broadcast %212 : vector<16x1xf32> to vector<16x16xf32>
    %214 = arith.mulf %209, %213 : vector<16x16xf32>
    %cst_76 = arith.constant dense<0.000000e+00> : vector<16x16xf32>
    %215 = tpu.matmul %214, %200, %cst_76 {dimension_numbers = #tpu.dot_dimension_numbers<[1], [0], [0], [1], [0, 0, 1, 1], [], []>} : vector<16x16xf32>, vector<16x16xf32>, vector<16x16xf32> -> vector<16x16xf32>
    %216 = tpu.concatenate %197, %215 in 1 : vector<16x16xf32>, vector<16x16xf32> -> vector<16x32xf32>
    %cst_77 = arith.constant dense<0.000000e+00> : vector<16x32xf32>
    %217 = tpu.matmul %216, %2, %cst_77 {dimension_numbers = #tpu.dot_dimension_numbers<[1], [0], [0], [1], [0, 0, 1, 1], [], []>} : vector<16x32xf32>, vector<32x32xf32>, vector<16x32xf32> -> vector<16x32xf32>
    %218 = vector.broadcast %14 : vector<1x32xf32> to vector<16x32xf32>
    %219 = arith.addf %217, %218 : vector<16x32xf32>
    %220 = arith.addf %176, %219 : vector<16x32xf32>
    %cst_78 = arith.constant dense<0.000000e+00> : vector<16xf32>
    %221 = vector.multi_reduction <add>, %220, %cst_78 [1] : vector<16x32xf32> to vector<16xf32>
    %222 = vector.shape_cast %221 : vector<16xf32> to vector<16x1xf32>
    %cst_79 = arith.constant 3.200000e+01 : f32
    %223 = vector.broadcast %cst_79 : f32 to vector<16x1xf32>
    %224 = arith.divf %222, %223 : vector<16x1xf32>
    %225 = vector.broadcast %224 : vector<16x1xf32> to vector<16x32xf32>
    %226 = arith.subf %220, %225 : vector<16x32xf32>
    %227 = arith.mulf %226, %226 : vector<16x32xf32>
    %cst_80 = arith.constant dense<0.000000e+00> : vector<16xf32>
    %228 = vector.multi_reduction <add>, %227, %cst_80 [1] : vector<16x32xf32> to vector<16xf32>
    %229 = vector.shape_cast %228 : vector<16xf32> to vector<16x1xf32>
    %cst_81 = arith.constant 3.200000e+01 : f32
    %230 = vector.broadcast %cst_81 : f32 to vector<16x1xf32>
    %231 = arith.divf %229, %230 : vector<16x1xf32>
    %232 = vector.broadcast %224 : vector<16x1xf32> to vector<16x32xf32>
    %233 = arith.subf %220, %232 : vector<16x32xf32>
    %cst_82 = arith.constant 9.99999996E-13 : f32
    %234 = vector.broadcast %cst_82 : f32 to vector<16x1xf32>
    %235 = arith.addf %231, %234 : vector<16x1xf32>
    %236 = math.rsqrt %235 : vector<16x1xf32>
    %237 = vector.broadcast %236 : vector<16x1xf32> to vector<16x32xf32>
    %238 = arith.mulf %233, %237 : vector<16x32xf32>
    %239 = vector.broadcast %15 : vector<1x32xf32> to vector<16x32xf32>
    %240 = arith.mulf %238, %239 : vector<16x32xf32>
    %241 = vector.broadcast %16 : vector<1x32xf32> to vector<16x32xf32>
    %242 = arith.addf %240, %241 : vector<16x32xf32>
    %cst_83 = arith.constant dense<0.000000e+00> : vector<16x64xf32>
    %243 = tpu.matmul %242, %3, %cst_83 {dimension_numbers = #tpu.dot_dimension_numbers<[1], [0], [0], [1], [0, 0, 1, 1], [], []>} : vector<16x32xf32>, vector<32x64xf32>, vector<16x64xf32> -> vector<16x64xf32>
    %244 = vector.broadcast %17 : vector<1x64xf32> to vector<16x64xf32>
    %245 = arith.addf %243, %244 : vector<16x64xf32>
    %cst_84 = arith.constant 5.000000e-01 : f32
    %246 = vector.broadcast %cst_84 : f32 to vector<16x64xf32>
    %247 = arith.mulf %246, %245 : vector<16x64xf32>
    %cst_85 = arith.constant 4.471500e-02 : f32
    %248 = vector.broadcast %cst_85 : f32 to vector<16x64xf32>
    %249 = arith.mulf %248, %245 : vector<16x64xf32>
    %250 = arith.mulf %249, %245 : vector<16x64xf32>
    %251 = arith.mulf %250, %245 : vector<16x64xf32>
    %252 = arith.addf %245, %251 : vector<16x64xf32>
    %cst_86 = arith.constant 0.797884583 : f32
    %253 = vector.broadcast %cst_86 : f32 to vector<16x64xf32>
    %254 = arith.mulf %253, %252 : vector<16x64xf32>
    %255 = math.tanh %254 : vector<16x64xf32>
    %cst_87 = arith.constant 1.000000e+00 : f32
    %256 = vector.broadcast %cst_87 : f32 to vector<16x64xf32>
    %257 = arith.addf %256, %255 : vector<16x64xf32>
    %258 = arith.mulf %247, %257 : vector<16x64xf32>
    %cst_88 = arith.constant dense<0.000000e+00> : vector<16x32xf32>
    %259 = tpu.matmul %258, %4, %cst_88 {dimension_numbers = #tpu.dot_dimension_numbers<[1], [0], [0], [1], [0, 0, 1, 1], [], []>} : vector<16x64xf32>, vector<64x32xf32>, vector<16x32xf32> -> vector<16x32xf32>
    %260 = vector.broadcast %18 : vector<1x32xf32> to vector<16x32xf32>
    %261 = arith.addf %259, %260 : vector<16x32xf32>
    %262 = arith.addf %242, %261 : vector<16x32xf32>
    %cst_89 = arith.constant dense<0.000000e+00> : vector<16xf32>
    %263 = vector.multi_reduction <add>, %262, %cst_89 [1] : vector<16x32xf32> to vector<16xf32>
    %264 = vector.shape_cast %263 : vector<16xf32> to vector<16x1xf32>
    %cst_90 = arith.constant 3.200000e+01 : f32
    %265 = vector.broadcast %cst_90 : f32 to vector<16x1xf32>
    %266 = arith.divf %264, %265 : vector<16x1xf32>
    %267 = vector.broadcast %266 : vector<16x1xf32> to vector<16x32xf32>
    %268 = arith.subf %262, %267 : vector<16x32xf32>
    %269 = arith.mulf %268, %268 : vector<16x32xf32>
    %cst_91 = arith.constant dense<0.000000e+00> : vector<16xf32>
    %270 = vector.multi_reduction <add>, %269, %cst_91 [1] : vector<16x32xf32> to vector<16xf32>
    %271 = vector.shape_cast %270 : vector<16xf32> to vector<16x1xf32>
    %cst_92 = arith.constant 3.200000e+01 : f32
    %272 = vector.broadcast %cst_92 : f32 to vector<16x1xf32>
    %273 = arith.divf %271, %272 : vector<16x1xf32>
    %274 = vector.broadcast %266 : vector<16x1xf32> to vector<16x32xf32>
    %275 = arith.subf %262, %274 : vector<16x32xf32>
    %cst_93 = arith.constant 9.99999996E-13 : f32
    %276 = vector.broadcast %cst_93 : f32 to vector<16x1xf32>
    %277 = arith.addf %273, %276 : vector<16x1xf32>
    %278 = math.rsqrt %277 : vector<16x1xf32>
    %279 = vector.broadcast %278 : vector<16x1xf32> to vector<16x32xf32>
    %280 = arith.mulf %275, %279 : vector<16x32xf32>
    %281 = vector.broadcast %19 : vector<1x32xf32> to vector<16x32xf32>
    %282 = arith.mulf %280, %281 : vector<16x32xf32>
    %283 = vector.broadcast %20 : vector<1x32xf32> to vector<16x32xf32>
    %284 = arith.addf %282, %283 : vector<16x32xf32>
    %c0_94 = arith.constant 0 : index
    %c0_95 = arith.constant 0 : index
    %285 = vector.load %arg3[%c0_94, %c0_95] : memref<1x16xf32, #tpu.memory_space<vmem>>, vector<1x16xf32>
    %286 = vector.broadcast %285 : vector<1x16xf32> to vector<2x16xf32>
    %287 = arith.mulf %22, %286 : vector<2x16xf32>
    %cst_96 = arith.constant dense<0.000000e+00> : vector<2xf32>
    %288 = vector.multi_reduction <add>, %287, %cst_96 [1] : vector<2x16xf32> to vector<2xf32>
    %289 = vector.shape_cast %288 : vector<2xf32> to vector<2x1xf32>
    %cst_97 = arith.constant dense<0.000000e+00> : vector<2x32xf32>
    %290 = tpu.matmul %287, %284, %cst_97 {dimension_numbers = #tpu.dot_dimension_numbers<[1], [0], [0], [1], [0, 0, 1, 1], [], []>} : vector<2x16xf32>, vector<16x32xf32>, vector<2x32xf32> -> vector<2x32xf32>
    %291 = vector.broadcast %289 : vector<2x1xf32> to vector<2x32xf32>
    %292 = arith.divf %290, %291 : vector<2x32xf32>
    %cst_98 = arith.constant dense<0.000000e+00> : vector<2x128xf32>
    %293 = tpu.matmul %292, %5, %cst_98 {dimension_numbers = #tpu.dot_dimension_numbers<[1], [0], [0], [1], [0, 0, 1, 1], [], []>} : vector<2x32xf32>, vector<32x128xf32>, vector<2x128xf32> -> vector<2x128xf32>
    %294 = vector.broadcast %21 : vector<1x128xf32> to vector<2x128xf32>
    %295 = arith.addf %293, %294 : vector<2x128xf32>
    %c0_99 = arith.constant 0 : index
    %c0_100 = arith.constant 0 : index
    %296 = vector.load %arg6[%c0_99, %c0_100] : memref<2x128xf32, #tpu.memory_space<vmem>>, vector<2x128xf32>
    tpu.vector_store %arg6[%c0_99, %c0_100], %295 {strides = array<i32>} : memref<2x128xf32, #tpu.memory_space<vmem>>, vector<2x128xf32>,
    return
  }
}

</mosaic_0001>

<llo_original>
// kernel: beike_forward.1
$region0: #{beike_forward.1}
  #allocation0 [shape = 'u32[]', space=smem, size = 0x4, offset = 0x4, fixed_abs, tag = 'smem constant byte address 0x4 - core index']
  #allocation1 [shape = 'u32[144,128]{1,0:T(1,128)}', space=vmem, size = 0x12000, scoped, tag = 'internal scratch']
  %s0 = inlined_call_operand.vmem [shape: s32[16,1], index: 0, kind: input, shape index: {}]
  %s1 = inlined_call_operand.vmem [shape: s32[16,1], index: 1, kind: input, shape index: {}]
  %s2 = inlined_call_operand.vmem [shape: f32[1,16], index: 2, kind: input, shape index: {}]
  %s3 = inlined_call_operand.vmem [shape: f32[1,16], index: 3, kind: input, shape index: {}]
  %s4 = inlined_call_operand.hbm [shape: f32[304,128], index: 4, kind: input, shape index: {}]
  %s5 = inlined_call_operand.vmem [shape: f32[16,128], index: 5, kind: input, shape index: {}]
  %s6 = inlined_call_operand.hbm [shape: f32[2,128], index: 6, kind: output, shape index: {}]
  %s7 = sld [smem:[#allocation0]]
  $region38: #{beike_forward.1} parent=0
    _
  %s9 = ssub.s32 1, %s7
  %s10 = scalar_select 0, %s9, %s7
  $region1: #{beike_forward.1} parent=0
    #allocation2 [shape = 'u8[155648]{0}', space=vmem, size = 0x26000, scoped, tag = 'input window, operand 4, single buffered']
    #allocation3 [shape = 's32[1]{0}', space=sflag, size = 0x4, scoped, tag = 'scoped memory for beike_forward.1']
    #allocation4 [shape = 's32[1]{0}', space=sflag, size = 0x4, scoped, tag = 'scoped memory for beike_forward.1']
    #allocation5 [shape = 'u8[1024]{0}', space=vmem, size = 0x400, scoped, tag = 'output window, operand 0, single buffered']
    %11 = vsyncpa [#allocation3], 0
    %12 = vsyncpa [#allocation4], 0
    // Predicated region
    $region2: #{beike_forward.1} parent=1 // pred_check
      _
    $region3: #{beike_forward.1} parent=1 // pred_check_branch
      %14 = sbr.rel (0) target = $region5
    $region4: #{beike_forward.1} parent=1 // pred_region
      _
    $region5: #{beike_forward.1} parent=1 // pred_fallthru
      _
    // Predicated region
    $region6: #{beike_forward.1} parent=1 // pred_check
      _
    $region7: #{beike_forward.1} parent=1 // pred_check_branch
      %16 = sbr.rel (0) target = $region9
    $region8: #{beike_forward.1} parent=1 // pred_region
      _
    $region9: #{beike_forward.1} parent=1 // pred_fallthru
      _
    // Predicated region
    $region10: #{beike_forward.1} parent=1 // pred_check
      _
    $region11: #{beike_forward.1} parent=1 // pred_check_branch
      %18 = sbr.rel (0) target = $region13
    $region12: #{beike_forward.1} parent=1 // pred_region
      _
    $region13: #{beike_forward.1} parent=1 // pred_fallthru
      _
    // Predicated region
    $region14: #{beike_forward.1} parent=1 // pred_check
      _
    $region15: #{beike_forward.1} parent=1 // pred_check_branch
      %20 = sbr.rel (0) target = $region17
    $region16: #{beike_forward.1} parent=1 // pred_region
      _
    $region17: #{beike_forward.1} parent=1 // pred_fallthru
      _
    // Predicated region
    $region18: #{beike_forward.1} parent=1 // pred_check
      _
    $region19: #{beike_forward.1} parent=1 // pred_check_branch
      %22 = sbr.rel (0) target = $region21
    $region20: #{beike_forward.1} parent=1 // pred_region
      %s24 = ssub.s32 4864, 4864
      %25 = vsyncadd [#allocation3], %s24
      %s26 = sshll.u32 [#allocation2], 4
      %s27 = int_to_ptr.vmem [resolvable:$true] %s26
      %32 = dma.hbm_to_vmem [thread:$0]  %s4, 4864, %s27, [#allocation3], 128, 128, 8
    $region21: #{beike_forward.1} parent=1 // pred_fallthru
      _
    // Predicated region
    $region22: #{beike_forward.1} parent=1 // pred_check
      _
    $region23: #{beike_forward.1} parent=1 // pred_check_branch
      %34 = sbr.rel (0) target = $region25
    $region24: #{beike_forward.1} parent=1 // pred_region
      _
    $region25: #{beike_forward.1} parent=1 // pred_fallthru
      _
    // Predicated region
    $region26: #{beike_forward.1} parent=1 // pred_check
      _
    $region27: #{beike_forward.1} parent=1 // pred_check_branch
      %36 = sbr.rel (0) target = $region29
    $region28: #{beike_forward.1} parent=1 // pred_region
      %37 = dma.done [#allocation3], 4864
    $region29: #{beike_forward.1} parent=1 // pred_fallthru
      _
    %v38 = vld [vmem:[#allocation2] sm:$0xff]
    %v39 = vld [vmem:[#allocation2 + $0x8] sm:$0xff]
    %v40 = vld [vmem:[#allocation2 + $0x10] sm:$0xff]
    %v41 = vld [vmem:[#allocation2 + $0x18] sm:$0xff]
    %v42 = vld [vmem:[#allocation2 + $0x20] sm:$0xff]
    %v43 = vld [vmem:[#allocation2 + $0x28] sm:$0xff]
    %v44 = vld [vmem:[#allocation2 + $0x30] sm:$0xff]
    %v45 = vld [vmem:[#allocation2 + $0x38] sm:$0xff]
    %v46 = vld [vmem:[#allocation2 + $0x40] sm:$0xff]
    %v47 = vld [vmem:[#allocation2 + $0x48] sm:$0xff]
    %v48 = vld [vmem:[#allocation2 + $0x50] sm:$0xff]
    %v49 = vld [vmem:[#allocation2 + $0x58] sm:$0xff]
    %v50 = vld [vmem:[#allocation2 + $0x60] sm:$0xff]
    %v51 = vld [vmem:[#allocation2 + $0x68] sm:$0xff]
    %v52 = vld [vmem:[#allocation2 + $0x70] sm:$0xff]
    %v53 = vld [vmem:[#allocation2 + $0x78] sm:$0xff]
    %v54 = vld [vmem:[#allocation2 + $0x80] sm:$0xff]
    %v55 = vld [vmem:[#allocation2 + $0x88] sm:$0xff]
    %v56 = vld [vmem:[#allocation2 + $0x90] sm:$0xff]
    %v57 = vld [vmem:[#allocation2 + $0x98] sm:$0xff]
    %v58 = vld [vmem:[#allocation2 + $0xa0] sm:$0xff]
    %v59 = vld [vmem:[#allocation2 + $0xa8] sm:$0xff]
    %v60 = vld [vmem:[#allocation2 + $0xb0] sm:$0xff]
    %v61 = vld [vmem:[#allocation2 + $0xb8] sm:$0xff]
    %v62 = vld [vmem:[#allocation2 + $0xc0] sm:$0xff]
    %v63 = vld [vmem:[#allocation2 + $0xc8] sm:$0xff]
    %v64 = vld [vmem:[#allocation2 + $0xd0] sm:$0xff]
    %v65 = vld [vmem:[#allocation2 + $0xd8] sm:$0xff]
    %v66 = vld [vmem:[#allocation2 + $0xe0] sm:$0xff]
    %v67 = vld [vmem:[#allocation2 + $0xe8] sm:$0xff]
    %v68 = vld [vmem:[#allocation2 + $0xf0] sm:$0xff]
    %v69 = vld [vmem:[#allocation2 + $0xf8] sm:$0xff]
    %v70 = vld [vmem:[#allocation2 + $0x100] sm:$0xff]
    %v71 = vld [vmem:[#allocation2 + $0x108] sm:$0xff]
    %v72 = vld [vmem:[#allocation2 + $0x110] sm:$0xff]
    %v73 = vld [vmem:[#allocation2 + $0x118] sm:$0xff]
    %v74 = vld [vmem:[#allocation2 + $0x120] sm:$0xff]
    %v75 = vld [vmem:[#allocation2 + $0x128] sm:$0xff]
    %v76 = vld [vmem:[%s5] sm:$0x1]
    %v77 = vld [vmem:[%s5 + $0x1] sm:$0x1]
    %v78 = vld [vmem:[%s5 + $0x2] sm:$0x1]
    %v79 = vld [vmem:[%s5 + $0x3] sm:$0x1]
    %v80 = vld [vmem:[%s5 + $0x4] sm:$0x1]
    %v81 = vld [vmem:[%s5 + $0x5] sm:$0x1]
    %v82 = vld [vmem:[%s5 + $0x6] sm:$0x1]
    %v83 = vld [vmem:[%s5 + $0x7] sm:$0x1]
    %v84 = vld [vmem:[%s5 + $0x8] sm:$0x1]
    %v85 = vld [vmem:[%s5 + $0x9] sm:$0x1]
    %v86 = vld [vmem:[%s5 + $0xa] sm:$0x1]
    %v87 = vld [vmem:[%s5 + $0xb] sm:$0x1]
    %v88 = vld [vmem:[%s5 + $0xc] sm:$0x1]
    %v89 = vld [vmem:[%s5 + $0xd] sm:$0x3]
    %v90 = vld [vmem:[%s0] sm:$0xff]
    %v91 = vld [vmem:[%s0 + $0x8] sm:$0xff]
    %v92 = vlaneseq
    %v93 = vand.u32 %v92, 127
    %94 = vset.pattern.permute.xlu0 0
    %95 = vperm.xlu0 %94, %v90
    %v96 = vpop.permute.xlu0 %95
    %97 = vset.pattern.permute.xlu0 0
    %98 = vperm.xlu0 %97, %v91
    %v99 = vpop.permute.xlu0 %98
    %vm100 = vcmp.eq.s32.totalorder %v93, %v96
    %vm101 = vcmp.eq.s32.totalorder %v93, %v99
    %v102 = vsel %vm100, 1, 0
    %v103 = vsel %vm101, 1, 0
    %v104 = vcvt.s32.f32 %v102
    %v105 = vcvt.s32.f32 %v103
    %v106 = vld [vmem:[%s1] sm:$0xff]
    %v107 = vld [vmem:[%s1 + $0x8] sm:$0xff]
    %v108 = vcvt.s32.f32 %v106
    %v109 = vcvt.s32.f32 %v107
    %vm110 = vcmask 523264
    %v112 = vsel %vm110, %v104, 0
    %v115 = vsel %vm110, %v105, 0
    %117 = vmatprep.subr.mxu0 0.0
    %118 = vmatpush1.msra.mxu0 %v64
    %119 = vmatprep.subr.mxu0 0.0
    %120 = vmatpush1.msra.mxu0 %v65
    %121 = vmatprep.subr.mxu0 0.0
    %122 = vmatpush1.msra.mxu0 %v66
    %123 = vmatprep.subr.mxu0 0.0
    %124 = vmatpush1.msra.mxu0 %v67
    %125 = vmatprep.subr.mxu0 0.0
    %126 = vmatpush1.msra.mxu0 %v68
    %127 = vmatprep.subr.mxu0 0.0
    %128 = vmatpush1.msra.mxu0 %v69
    %129 = vmatprep.subr.mxu0 0.0
    %130 = vmatpush1.msra.mxu0 %v70
    %131 = vmatprep.subr.mxu0 0.0
    %132 = vmatpush1.msra.mxu0 %v71
    %133 = vmatprep.subr.mxu0 0.0
    %134 = vmatpush1.msra.mxu0 0.0
    %135 = vmatprep.subr.mxu0 0.0
    %136 = vmatpush1.msra.mxu0 0.0
    %137 = vmatprep.subr.mxu0 0.0
    %138 = vmatpush1.msra.mxu0 0.0
    %139 = vmatprep.subr.mxu0 0.0
    %140 = vmatpush1.msra.mxu0 0.0
    %141 = vmatprep.subr.mxu0 0.0
    %142 = vmatpush1.msra.mxu0 0.0
    %143 = vmatprep.subr.mxu0 0.0
    %144 = vmatpush1.msra.mxu0 0.0
    %145 = vmatprep.subr.mxu0 0.0
    %146 = vmatpush1.msra.mxu0 0.0
    %147 = vmatprep.subr.mxu0 0.0
    %148 = vmatpush1.msra.mxu0 0.0
    %149 = vmatprep.subr.mxu0 0.0
    %150 = vmatpush1.msra.mxu0 0.0
    %151 = vmatprep.subr.mxu0 0.0
    %152 = vmatpush1.msra.mxu0 0.0
    %153 = vmatprep.subr.mxu0 0.0
    %154 = vmatpush1.msra.mxu0 0.0
    %155 = vmatprep.subr.mxu0 0.0
    %156 = vmatpush1.msra.mxu0 0.0
    %157 = vmatprep.subr.mxu0 0.0
    %158 = vmatpush1.msra.mxu0 0.0
    %159 = vmatprep.subr.mxu0 0.0
    %160 = vmatpush1.msra.mxu0 0.0
    %161 = vmatprep.subr.mxu0 0.0
    %162 = vmatpush1.msra.mxu0 0.0
    %163 = vmatprep.subr.mxu0 0.0
    %164 = vmatpush1.msra.mxu0 0.0
    %165 = vmatprep.subr.mxu0 0.0
    %166 = vmatpush1.msra.mxu0 0.0
    %167 = vmatprep.subr.mxu0 0.0
    %168 = vmatpush1.msra.mxu0 0.0
    %169 = vmatprep.subr.mxu0 0.0
    %170 = vmatpush1.msra.mxu0 0.0
    %171 = vmatprep.subr.mxu0 0.0
    %172 = vmatpush1.msra.mxu0 0.0
    %173 = vmatprep.subr.mxu0 0.0
    %174 = vmatpush1.msra.mxu0 0.0
    %175 = vmatprep.subr.mxu0 0.0
    %176 = vmatpush1.msra.mxu0 0.0
    %177 = vmatprep.subr.mxu0 0.0
    %178 = vmatpush1.msra.mxu0 0.0
    %179 = vmatprep.subr.mxu0 0.0
    %180 = vmatpush1.msra.mxu0 0.0
    %181 = vmatprep.mubr.f32.mxu0 0.0
    %182 = vmatmul.mubr.f32.gmra.mrb[0].mxu0 %v112
    %v183 = vpop.f32.mrb[0].mxu0
    %v184 = vadd.f32 %v72, %v183
    %v185 = vpop.f32.mrb[0].mxu0
    %186 = vmatprep.mubr.f32.mxu0 0.0
    %187 = vmatmul.mubr.f32.gmra.mrb[0].mxu0 %v115
    %v188 = vpop.f32.mrb[0].mxu0
    %v189 = vadd.f32 %v73, %v188
    %v190 = vpop.f32.mrb[0].mxu0
    %191 = vdwg.mxu0
    %193 = vset.pattern.permute.xlu0 0
    %194 = vperm.xlu0 %193, %v108
    %v195 = vpop.permute.xlu0 %194
    %198 = vset.pattern.permute.xlu0 0
    %199 = vperm.xlu0 %198, %v109
    %v200 = vpop.permute.xlu0 %199
    %v202 = vlaneseq
    %v203 = vshrl.u32 %v202, 7
    %v204 = vsub.s32 0, %v203
    %v205 = vrot.slane %v78, %v204
    %v206 = vmul.f32 %v195, %v205
    %v207 = vmul.f32 %v200, %v205
    %v208 = vadd.f32 %v184, %v206
    %v209 = vadd.f32 %v189, %v207
    %vm210 = vcmask 130048
    %v211 = vsel %vm210, %v208, 0.0
    %212 = vadd.xlane.f32.xlu0 %v211
    %v213 = vpop.xlane.xlu0 %212
    %v214 = vsel %vm210, %v209, 0.0
    %215 = vadd.xlane.f32.xlu0 %v214
    %v216 = vpop.xlane.xlu0 %215
    %v217 = vrcp.pop 16.0
    %v218 = vmul.f32 %v213, %v217
    %v219 = vmul.f32 %v216, %v217
    %v220 = vsub.f32 %v208, %v218
    %v221 = vsub.f32 %v209, %v219
    %v222 = vmul.f32 %v220, %v220
    %v223 = vmul.f32 %v221, %v221
    %v224 = vsel %vm210, %v222, 0.0
    %225 = vadd.xlane.f32.xlu0 %v224
    %v226 = vpop.xlane.xlu0 %225
    %v227 = vsel %vm210, %v223, 0.0
    %228 = vadd.xlane.f32.xlu0 %v227
    %v229 = vpop.xlane.xlu0 %228
    %v230 = vmul.f32 %v226, %v217
    %v231 = vmul.f32 %v229, %v217
    %v232 = vadd.f32 %v230, 1e-12
    %v233 = vadd.f32 %v231, 1e-12
    %v234 = vrsqrt.pop %v232
    %v235 = vrsqrt.pop %v233
    %v236 = vmul.f32 %v220, %v234
    %v237 = vmul.f32 %v221, %v235
    %v238 = vlaneseq
    %v239 = vshrl.u32 %v238, 7
    %v240 = vsub.s32 0, %v239
    %v241 = vrot.slane %v76, %v240
    %v242 = vmul.f32 %v236, %v241
    %v243 = vmul.f32 %v237, %v241
    %v244 = vlaneseq
    %v245 = vshrl.u32 %v244, 7
    %v246 = vsub.s32 0, %v245
    %v247 = vrot.slane %v77, %v246
    %v248 = vadd.f32 %v242, %v247
    %v249 = vadd.f32 %v243, %v247
    %v250 = vlaneseq
    %v251 = vshrl.u32 %v250, 7
    %v252 = vsub.s32 0, %v251
    %v253 = vrot.slane %v79, %v252
    %v255 = vsel %vm210, %v248, 0
    %v258 = vsel %vm210, %v249, 0
    %260 = vmatprep.subr.mxu0 0.0
    %261 = vmatpush1.msra.mxu0 %v38
    %262 = vmatprep.subr.mxu0 0.0
    %263 = vmatpush1.msra.mxu0 %v39
    %264 = vmatprep.subr.mxu0 0.0
    %265 = vmatpush1.msra.mxu0 0.0
    %266 = vmatprep.subr.mxu0 0.0
    %267 = vmatpush1.msra.mxu0 0.0
    %268 = vmatprep.subr.mxu0 0.0
    %269 = vmatpush1.msra.mxu0 0.0
    %270 = vmatprep.subr.mxu0 0.0
    %271 = vmatpush1.msra.mxu0 0.0
    %272 = vmatprep.subr.mxu0 0.0
    %273 = vmatpush1.msra.mxu0 0.0
    %274 = vmatprep.subr.mxu0 0.0
    %275 = vmatpush1.msra.mxu0 0.0
    %276 = vmatprep.subr.mxu0 0.0
    %277 = vmatpush1.msra.mxu0 0.0
    %278 = vmatprep.subr.mxu0 0.0
    %279 = vmatpush1.msra.mxu0 0.0
    %280 = vmatprep.subr.mxu0 0.0
    %281 = vmatpush1.msra.mxu0 0.0
    %282 = vmatprep.subr.mxu0 0.0
    %283 = vmatpush1.msra.mxu0 0.0
    %284 = vmatprep.subr.mxu0 0.0
    %285 = vmatpush1.msra.mxu0 0.0
    %286 = vmatprep.subr.mxu0 0.0
    %287 = vmatpush1.msra.mxu0 0.0
    %288 = vmatprep.subr.mxu0 0.0
    %289 = vmatpush1.msra.mxu0 0.0
    %290 = vmatprep.subr.mxu0 0.0
    %291 = vmatpush1.msra.mxu0 0.0
    %292 = vmatprep.subr.mxu0 0.0
    %293 = vmatpush1.msra.mxu0 0.0
    %294 = vmatprep.subr.mxu0 0.0
    %295 = vmatpush1.msra.mxu0 0.0
    %296 = vmatprep.subr.mxu0 0.0
    %297 = vmatpush1.msra.mxu0 0.0
    %298 = vmatprep.subr.mxu0 0.0
    %299 = vmatpush1.msra.mxu0 0.0
    %300 = vmatprep.subr.mxu0 0.0
    %301 = vmatpush1.msra.mxu0 0.0
    %302 = vmatprep.subr.mxu0 0.0
    %303 = vmatpush1.msra.mxu0 0.0
    %304 = vmatprep.subr.mxu0 0.0
    %305 = vmatpush1.msra.mxu0 0.0
    %306 = vmatprep.subr.mxu0 0.0
    %307 = vmatpush1.msra.mxu0 0.0
    %308 = vmatprep.subr.mxu0 0.0
    %309 = vmatpush1.msra.mxu0 0.0
    %310 = vmatprep.subr.mxu0 0.0
    %311 = vmatpush1.msra.mxu0 0.0
    %312 = vmatprep.subr.mxu0 0.0
    %313 = vmatpush1.msra.mxu0 0.0
    %314 = vmatprep.subr.mxu0 0.0
    %315 = vmatpush1.msra.mxu0 0.0
    %316 = vmatprep.subr.mxu0 0.0
    %317 = vmatpush1.msra.mxu0 0.0
    %318 = vmatprep.subr.mxu0 0.0
    %319 = vmatpush1.msra.mxu0 0.0
    %320 = vmatprep.subr.mxu0 0.0
    %321 = vmatpush1.msra.mxu0 0.0
    %322 = vmatprep.subr.mxu0 0.0
    %323 = vmatpush1.msra.mxu0 0.0
    %324 = vmatprep.mubr.f32.mxu0 0.0
    %325 = vmatmul.mubr.f32.gmra.mrb[0].mxu0 %v255
    %v326 = vpop.f32.mrb[0].mxu0
    %v327 = vadd.f32 %v253, %v326
    %v328 = vpop.f32.mrb[0].mxu0
    %329 = vmatprep.mubr.f32.mxu0 0.0
    %330 = vmatmul.mubr.f32.gmra.mrb[0].mxu0 %v258
    %v331 = vpop.f32.mrb[0].mxu0
    %v332 = vadd.f32 %v253, %v331
    %v333 = vpop.f32.mrb[0].mxu0
    %334 = vdwg.mxu0
    %v335 = vld [vmem:[%s2] sm:$0x1]
    %v336 = vsub.f32 1.0, %v335
    %v337 = vmul.f32 %v336, -10000.0
    %v339 = vlaneseq
    %v340 = vshrl.u32 %v339, 7
    %v341 = vsub.s32 0, %v340
    %v342 = vrot.slane %v337, %v341
    %v344 = vadd.f32 %v74, %v342
    %v345 = vadd.f32 %v75, %v342
    %v346 = vlaneseq
    %v347 = vshrl.u32 %v346, 7
    %v348 = vsub.s32 0, %v347
    %v349 = vrot.slane %v80, %v348
    %vm350 = vcmask 261120
    %v352 = vsel %vm350, %v327, 0
    %v355 = vsel %vm350, %v332, 0
    %357 = vmatprep.subr.mxu0 0.0
    %358 = vmatpush1.msra.mxu0 %v40
    %359 = vmatprep.subr.mxu0 0.0
    %360 = vmatpush1.msra.mxu0 %v41
    %361 = vmatprep.subr.mxu0 0.0
    %362 = vmatpush1.msra.mxu0 %v42
    %363 = vmatprep.subr.mxu0 0.0
    %364 = vmatpush1.msra.mxu0 %v43
    %365 = vmatprep.subr.mxu0 0.0
    %366 = vmatpush1.msra.mxu0 0.0
    %367 = vmatprep.subr.mxu0 0.0
    %368 = vmatpush1.msra.mxu0 0.0
    %369 = vmatprep.subr.mxu0 0.0
    %370 = vmatpush1.msra.mxu0 0.0
    %371 = vmatprep.subr.mxu0 0.0
    %372 = vmatpush1.msra.mxu0 0.0
    %373 = vmatprep.subr.mxu0 0.0
    %374 = vmatpush1.msra.mxu0 0.0
    %375 = vmatprep.subr.mxu0 0.0
    %376 = vmatpush1.msra.mxu0 0.0
    %377 = vmatprep.subr.mxu0 0.0
    %378 = vmatpush1.msra.mxu0 0.0
    %379 = vmatprep.subr.mxu0 0.0
    %380 = vmatpush1.msra.mxu0 0.0
    %381 = vmatprep.subr.mxu0 0.0
    %382 = vmatpush1.msra.mxu0 0.0
    %383 = vmatprep.subr.mxu0 0.0
    %384 = vmatpush1.msra.mxu0 0.0
    %385 = vmatprep.subr.mxu0 0.0
    %386 = vmatpush1.msra.mxu0 0.0
    %387 = vmatprep.subr.mxu0 0.0
    %388 = vmatpush1.msra.mxu0 0.0
    %389 = vmatprep.subr.mxu0 0.0
    %390 = vmatpush1.msra.mxu0 0.0
    %391 = vmatprep.subr.mxu0 0.0
    %392 = vmatpush1.msra.mxu0 0.0
    %393 = vmatprep.subr.mxu0 0.0
    %394 = vmatpush1.msra.mxu0 0.0
    %395 = vmatprep.subr.mxu0 0.0
    %396 = vmatpush1.msra.mxu0 0.0
    %397 = vmatprep.subr.mxu0 0.0
    %398 = vmatpush1.msra.mxu0 0.0
    %399 = vmatprep.subr.mxu0 0.0
    %400 = vmatpush1.msra.mxu0 0.0
    %401 = vmatprep.subr.mxu0 0.0
    %402 = vmatpush1.msra.mxu0 0.0
    %403 = vmatprep.subr.mxu0 0.0
    %404 = vmatpush1.msra.mxu0 0.0
    %405 = vmatprep.subr.mxu0 0.0
    %406 = vmatpush1.msra.mxu0 0.0
    %407 = vmatprep.subr.mxu0 0.0
    %408 = vmatpush1.msra.mxu0 0.0
    %409 = vmatprep.subr.mxu0 0.0
    %410 = vmatpush1.msra.mxu0 0.0
    %411 = vmatprep.subr.mxu0 0.0
    %412 = vmatpush1.msra.mxu0 0.0
    %413 = vmatprep.subr.mxu0 0.0
    %414 = vmatpush1.msra.mxu0 0.0
    %415 = vmatprep.subr.mxu0 0.0
    %416 = vmatpush1.msra.mxu0 0.0
    %417 = vmatprep.subr.mxu0 0.0
    %418 = vmatpush1.msra.mxu0 0.0
    %419 = vmatprep.subr.mxu0 0.0
    %420 = vmatpush1.msra.mxu0 0.0
    %421 = vmatprep.mubr.f32.mxu0 0.0
    %422 = vmatmul.mubr.f32.gmra.mrb[0].mxu0 %v352
    %v423 = vpop.f32.mrb[0].mxu0
    %v424 = vadd.f32 %v349, %v423
    %v425 = vpop.f32.mrb[0].mxu0
    %426 = vmatprep.mubr.f32.mxu0 0.0
    %427 = vmatmul.mubr.f32.gmra.mrb[0].mxu0 %v355
    %v428 = vpop.f32.mrb[0].mxu0
    %v429 = vadd.f32 %v349, %v428
    %v430 = vpop.f32.mrb[0].mxu0
    %431 = vdwg.mxu0
    %434 = vrot.lane.b32.xlu0 %v424, 96
    %v435 = vpop.permute.xlu0 %434
    %436 = vrot.lane.b32.xlu0 %v429, 96
    %v437 = vpop.permute.xlu0 %436
    %v438 = vsel %vm210, %v424, 0
    %v440 = vsel %vm210, %v429, 0
    %v442 = vsel %vm210, %v435, 0
    %v444 = vsel %vm210, %v437, 0
    %446 = vmatprep.subr.mxu0 0.0
    %447 = vmatpush1.xpose.msra.mxu0 %v442
    %448 = vmatprep.subr.mxu0 0.0
    %449 = vmatpush1.xpose.msra.mxu0 %v444
    %450 = vmatprep.subr.mxu0 0.0
    %451 = vmatpush1.xpose.msra.mxu0 0.0
    %452 = vmatprep.subr.mxu0 0.0
    %453 = vmatpush1.xpose.msra.mxu0 0.0
    %454 = vmatprep.subr.mxu0 0.0
    %455 = vmatpush1.xpose.msra.mxu0 0.0
    %456 = vmatprep.subr.mxu0 0.0
    %457 = vmatpush1.xpose.msra.mxu0 0.0
    %458 = vmatprep.subr.mxu0 0.0
    %459 = vmatpush1.xpose.msra.mxu0 0.0
    %460 = vmatprep.subr.mxu0 0.0
    %461 = vmatpush1.xpose.msra.mxu0 0.0
    %462 = vmatprep.subr.mxu0 0.0
    %463 = vmatpush1.xpose.msra.mxu0 0.0
    %464 = vmatprep.subr.mxu0 0.0
    %465 = vmatpush1.xpose.msra.mxu0 0.0
    %466 = vmatprep.subr.mxu0 0.0
    %467 = vmatpush1.xpose.msra.mxu0 0.0
    %468 = vmatprep.subr.mxu0 0.0
    %469 = vmatpush1.xpose.msra.mxu0 0.0
    %470 = vmatprep.subr.mxu0 0.0
    %471 = vmatpush1.xpose.msra.mxu0 0.0
    %472 = vmatprep.subr.mxu0 0.0
    %473 = vmatpush1.xpose.msra.mxu0 0.0
    %474 = vmatprep.subr.mxu0 0.0
    %475 = vmatpush1.xpose.msra.mxu0 0.0
    %476 = vmatprep.subr.mxu0 0.0
    %477 = vmatpush1.xpose.msra.mxu0 0.0
    %478 = vmatprep.subr.mxu0 0.0
    %479 = vmatpush1.xpose.msra.mxu0 0.0
    %480 = vmatprep.subr.mxu0 0.0
    %481 = vmatpush1.xpose.msra.mxu0 0.0
    %482 = vmatprep.subr.mxu0 0.0
    %483 = vmatpush1.xpose.msra.mxu0 0.0
    %484 = vmatprep.subr.mxu0 0.0
    %485 = vmatpush1.xpose.msra.mxu0 0.0
    %486 = vmatprep.subr.mxu0 0.0
    %487 = vmatpush1.xpose.msra.mxu0 0.0
    %488 = vmatprep.subr.mxu0 0.0
    %489 = vmatpush1.xpose.msra.mxu0 0.0
    %490 = vmatprep.subr.mxu0 0.0
    %491 = vmatpush1.xpose.msra.mxu0 0.0
    %492 = vmatprep.subr.mxu0 0.0
    %493 = vmatpush1.xpose.msra.mxu0 0.0
    %494 = vmatprep.subr.mxu0 0.0
    %495 = vmatpush1.xpose.msra.mxu0 0.0
    %496 = vmatprep.subr.mxu0 0.0
    %497 = vmatpush1.xpose.msra.mxu0 0.0
    %498 = vmatprep.subr.mxu0 0.0
    %499 = vmatpush1.xpose.msra.mxu0 0.0
    %500 = vmatprep.subr.mxu0 0.0
    %501 = vmatpush1.xpose.msra.mxu0 0.0
    %502 = vmatprep.subr.mxu0 0.0
    %503 = vmatpush1.xpose.msra.mxu0 0.0
    %504 = vmatprep.subr.mxu0 0.0
    %505 = vmatpush1.xpose.msra.mxu0 0.0
    %506 = vmatprep.subr.mxu0 0.0
    %507 = vmatpush1.xpose.msra.mxu0 0.0
    %508 = vmatprep.subr.mxu0 0.0
    %509 = vmatpush1.xpose.msra.mxu0 0.0
    %510 = vmatprep.mubr.f32.mxu0 0.0
    %511 = vmatmul.mubr.f32.gmra.mrb[0].mxu0 %v438
    %v512 = vpop.f32.mrb[0].mxu0
    %v513 = vadd.f32 0.0, %v512
    %v514 = vpop.f32.mrb[0].mxu0
    %515 = vmatprep.mubr.f32.mxu0 0.0
    %516 = vmatmul.mubr.f32.gmra.mrb[0].mxu0 %v440
    %v517 = vpop.f32.mrb[0].mxu0
    %v518 = vadd.f32 0.0, %v517
    %v519 = vpop.f32.mrb[0].mxu0
    %520 = vdwg.mxu0
    %v521 = vmul.f32 %v513, 0.25
    %v522 = vmul.f32 %v518, 0.25
    %v523 = vadd.f32 %v521, %v344
    %v524 = vadd.f32 %v522, %v345
    %v525 = vsel %vm210, %v523, -inf
    %526 = vmax.xlane.f32.xlu0 %v525
    %v527 = vpop.xlane.xlu0 %526
    %v528 = vsel %vm210, %v524, -inf
    %529 = vmax.xlane.f32.xlu0 %v528
    %v530 = vpop.xlane.xlu0 %529
    %v531 = vsub.f32 %v523, %v527
    %v532 = vsub.f32 %v524, %v530
    %v533 = vmul.f32 %v531, 1.442695
    %v534 = vpow.pop %v533
    %v535 = vmul.f32 %v532, 1.442695
    %v536 = vpow.pop %v535
    %v537 = vsel %vm210, %v534, 0.0
    %538 = vadd.xlane.f32.xlu0 %v537
    %v539 = vpop.xlane.xlu0 %538
    %v540 = vsel %vm210, %v536, 0.0
    %541 = vadd.xlane.f32.xlu0 %v540
    %v542 = vpop.xlane.xlu0 %541
    %v543 = vrcp.pop %v539
    %v544 = vrcp.pop %v542
    %v545 = vmul.f32 %v534, %v543
    %v546 = vmul.f32 %v536, %v544
    %547 = vrot.lane.b32.xlu0 %v424, 64
    %v548 = vpop.permute.xlu0 %547
    %549 = vrot.lane.b32.xlu0 %v429, 64
    %v550 = vpop.permute.xlu0 %549
    %v554 = vsel %vm210, %v545, 0
    %v557 = vsel %vm210, %v546, 0
    %559 = vmatprep.subr.mxu0 0.0
    %560 = vmatpush1.msra.mxu0 %v548
    %561 = vmatprep.subr.mxu0 0.0
    %562 = vmatpush1.msra.mxu0 %v550
    %563 = vmatprep.subr.mxu0 0.0
    %564 = vmatpush1.msra.mxu0 0.0
    %565 = vmatprep.subr.mxu0 0.0
    %566 = vmatpush1.msra.mxu0 0.0
    %567 = vmatprep.subr.mxu0 0.0
    %568 = vmatpush1.msra.mxu0 0.0
    %569 = vmatprep.subr.mxu0 0.0
    %570 = vmatpush1.msra.mxu0 0.0
    %571 = vmatprep.subr.mxu0 0.0
    %572 = vmatpush1.msra.mxu0 0.0
    %573 = vmatprep.subr.mxu0 0.0
    %574 = vmatpush1.msra.mxu0 0.0
    %575 = vmatprep.subr.mxu0 0.0
    %576 = vmatpush1.msra.mxu0 0.0
    %577 = vmatprep.subr.mxu0 0.0
    %578 = vmatpush1.msra.mxu0 0.0
    %579 = vmatprep.subr.mxu0 0.0
    %580 = vmatpush1.msra.mxu0 0.0
    %581 = vmatprep.subr.mxu0 0.0
    %582 = vmatpush1.msra.mxu0 0.0
    %583 = vmatprep.subr.mxu0 0.0
    %584 = vmatpush1.msra.mxu0 0.0
    %585 = vmatprep.subr.mxu0 0.0
    %586 = vmatpush1.msra.mxu0 0.0
    %587 = vmatprep.subr.mxu0 0.0
    %588 = vmatpush1.msra.mxu0 0.0
    %589 = vmatprep.subr.mxu0 0.0
    %590 = vmatpush1.msra.mxu0 0.0
    %591 = vmatprep.subr.mxu0 0.0
    %592 = vmatpush1.msra.mxu0 0.0
    %593 = vmatprep.subr.mxu0 0.0
    %594 = vmatpush1.msra.mxu0 0.0
    %595 = vmatprep.subr.mxu0 0.0
    %596 = vmatpush1.msra.mxu0 0.0
    %597 = vmatprep.subr.mxu0 0.0
    %598 = vmatpush1.msra.mxu0 0.0
    %599 = vmatprep.subr.mxu0 0.0
    %600 = vmatpush1.msra.mxu0 0.0
    %601 = vmatprep.subr.mxu0 0.0
    %602 = vmatpush1.msra.mxu0 0.0
    %603 = vmatprep.subr.mxu0 0.0
    %604 = vmatpush1.msra.mxu0 0.0
    %605 = vmatprep.subr.mxu0 0.0
    %606 = vmatpush1.msra.mxu0 0.0
    %607 = vmatprep.subr.mxu0 0.0
    %608 = vmatpush1.msra.mxu0 0.0
    %609 = vmatprep.subr.mxu0 0.0
    %610 = vmatpush1.msra.mxu0 0.0
    %611 = vmatprep.subr.mxu0 0.0
    %612 = vmatpush1.msra.mxu0 0.0
    %613 = vmatprep.subr.mxu0 0.0
    %614 = vmatpush1.msra.mxu0 0.0
    %615 = vmatprep.subr.mxu0 0.0
    %616 = vmatpush1.msra.mxu0 0.0
    %617 = vmatprep.subr.mxu0 0.0
    %618 = vmatpush1.msra.mxu0 0.0
    %619 = vmatprep.subr.mxu0 0.0
    %620 = vmatpush1.msra.mxu0 0.0
    %621 = vmatprep.subr.mxu0 0.0
    %622 = vmatpush1.msra.mxu0 0.0
    %623 = vmatprep.mubr.f32.mxu0 0.0
    %624 = vmatmul.mubr.f32.gmra.mrb[0].mxu0 %v554
    %v625 = vpop.f32.mrb[0].mxu0
    %v626 = vadd.f32 0.0, %v625
    %v627 = vpop.f32.mrb[0].mxu0
    %628 = vmatprep.mubr.f32.mxu0 0.0
    %629 = vmatmul.mubr.f32.gmra.mrb[0].mxu0 %v557
    %v630 = vpop.f32.mrb[0].mxu0
    %v631 = vadd.f32 0.0, %v630
    %v632 = vpop.f32.mrb[0].mxu0
    %633 = vdwg.mxu0
    %634 = vrot.lane.b32.xlu0 %v424, 112
    %v635 = vpop.permute.xlu0 %634
    %636 = vrot.lane.b32.xlu0 %v429, 112
    %v637 = vpop.permute.xlu0 %636
    %638 = vrot.lane.b32.xlu0 %v424, 80
    %v639 = vpop.permute.xlu0 %638
    %640 = vrot.lane.b32.xlu0 %v429, 80
    %v641 = vpop.permute.xlu0 %640
    %v642 = vsel %vm210, %v635, 0
    %v644 = vsel %vm210, %v637, 0
    %v646 = vsel %vm210, %v639, 0
    %v648 = vsel %vm210, %v641, 0
    %650 = vmatprep.subr.mxu0 0.0
    %651 = vmatpush1.xpose.msra.mxu0 %v646
    %652 = vmatprep.subr.mxu0 0.0
    %653 = vmatpush1.xpose.msra.mxu0 %v648
    %654 = vmatprep.subr.mxu0 0.0
    %655 = vmatpush1.xpose.msra.mxu0 0.0
    %656 = vmatprep.subr.mxu0 0.0
    %657 = vmatpush1.xpose.msra.mxu0 0.0
    %658 = vmatprep.subr.mxu0 0.0
    %659 = vmatpush1.xpose.msra.mxu0 0.0
    %660 = vmatprep.subr.mxu0 0.0
    %661 = vmatpush1.xpose.msra.mxu0 0.0
    %662 = vmatprep.subr.mxu0 0.0
    %663 = vmatpush1.xpose.msra.mxu0 0.0
    %664 = vmatprep.subr.mxu0 0.0
    %665 = vmatpush1.xpose.msra.mxu0 0.0
    %666 = vmatprep.subr.mxu0 0.0
    %667 = vmatpush1.xpose.msra.mxu0 0.0
    %668 = vmatprep.subr.mxu0 0.0
    %669 = vmatpush1.xpose.msra.mxu0 0.0
    %670 = vmatprep.subr.mxu0 0.0
    %671 = vmatpush1.xpose.msra.mxu0 0.0
    %672 = vmatprep.subr.mxu0 0.0
    %673 = vmatpush1.xpose.msra.mxu0 0.0
    %674 = vmatprep.subr.mxu0 0.0
    %675 = vmatpush1.xpose.msra.mxu0 0.0
    %676 = vmatprep.subr.mxu0 0.0
    %677 = vmatpush1.xpose.msra.mxu0 0.0
    %678 = vmatprep.subr.mxu0 0.0
    %679 = vmatpush1.xpose.msra.mxu0 0.0
    %680 = vmatprep.subr.mxu0 0.0
    %681 = vmatpush1.xpose.msra.mxu0 0.0
    %682 = vmatprep.subr.mxu0 0.0
    %683 = vmatpush1.xpose.msra.mxu0 0.0
    %684 = vmatprep.subr.mxu0 0.0
    %685 = vmatpush1.xpose.msra.mxu0 0.0
    %686 = vmatprep.subr.mxu0 0.0
    %687 = vmatpush1.xpose.msra.mxu0 0.0
    %688 = vmatprep.subr.mxu0 0.0
    %689 = vmatpush1.xpose.msra.mxu0 0.0
    %690 = vmatprep.subr.mxu0 0.0
    %691 = vmatpush1.xpose.msra.mxu0 0.0
    %692 = vmatprep.subr.mxu0 0.0
    %693 = vmatpush1.xpose.msra.mxu0 0.0
    %694 = vmatprep.subr.mxu0 0.0
    %695 = vmatpush1.xpose.msra.mxu0 0.0
    %696 = vmatprep.subr.mxu0 0.0
    %697 = vmatpush1.xpose.msra.mxu0 0.0
    %698 = vmatprep.subr.mxu0 0.0
    %699 = vmatpush1.xpose.msra.mxu0 0.0
    %700 = vmatprep.subr.mxu0 0.0
    %701 = vmatpush1.xpose.msra.mxu0 0.0
    %702 = vmatprep.subr.mxu0 0.0
    %703 = vmatpush1.xpose.msra.mxu0 0.0
    %704 = vmatprep.subr.mxu0 0.0
    %705 = vmatpush1.xpose.msra.mxu0 0.0
    %706 = vmatprep.subr.mxu0 0.0
    %707 = vmatpush1.xpose.msra.mxu0 0.0
    %708 = vmatprep.subr.mxu0 0.0
    %709 = vmatpush1.xpose.msra.mxu0 0.0
    %710 = vmatprep.subr.mxu0 0.0
    %711 = vmatpush1.xpose.msra.mxu0 0.0
    %712 = vmatprep.subr.mxu0 0.0
    %713 = vmatpush1.xpose.msra.mxu0 0.0
    %714 = vmatprep.mubr.f32.mxu0 0.0
    %715 = vmatmul.mubr.f32.gmra.mrb[0].mxu0 %v642
    %v716 = vpop.f32.mrb[0].mxu0
    %v717 = vadd.f32 0.0, %v716
    %v718 = vpop.f32.mrb[0].mxu0
    %719 = vmatprep.mubr.f32.mxu0 0.0
    %720 = vmatmul.mubr.f32.gmra.mrb[0].mxu0 %v644
    %v721 = vpop.f32.mrb[0].mxu0
    %v722 = vadd.f32 0.0, %v721
    %v723 = vpop.f32.mrb[0].mxu0
    %724 = vdwg.mxu0
    %v725 = vmul.f32 %v717, 0.25
    %v726 = vmul.f32 %v722, 0.25
    %v727 = vadd.f32 %v725, %v344
    %v728 = vadd.f32 %v726, %v345
    %v729 = vsel %vm210, %v727, -inf
    %730 = vmax.xlane.f32.xlu0 %v729
    %v731 = vpop.xlane.xlu0 %730
    %v732 = vsel %vm210, %v728, -inf
    %733 = vmax.xlane.f32.xlu0 %v732
    %v734 = vpop.xlane.xlu0 %733
    %v735 = vsub.f32 %v727, %v731
    %v736 = vsub.f32 %v728, %v734
    %v737 = vmul.f32 %v735, 1.442695
    %v738 = vpow.pop %v737
    %v739 = vmul.f32 %v736, 1.442695
    %v740 = vpow.pop %v739
    %v741 = vsel %vm210, %v738, 0.0
    %742 = vadd.xlane.f32.xlu0 %v741
    %v743 = vpop.xlane.xlu0 %742
    %v744 = vsel %vm210, %v740, 0.0
    %745 = vadd.xlane.f32.xlu0 %v744
    %v746 = vpop.xlane.xlu0 %745
    %v747 = vrcp.pop %v743
    %v748 = vrcp.pop %v746
    %v749 = vmul.f32 %v738, %v747
    %v750 = vmul.f32 %v740, %v748
    %751 = vrot.lane.b32.xlu0 %v424, 48
    %v752 = vpop.permute.xlu0 %751
    %753 = vrot.lane.b32.xlu0 %v429, 48
    %v754 = vpop.permute.xlu0 %753
    %v758 = vsel %vm210, %v749, 0
    %v761 = vsel %vm210, %v750, 0
    %763 = vmatprep.subr.mxu0 0.0
    %764 = vmatpush1.msra.mxu0 %v752
    %765 = vmatprep.subr.mxu0 0.0
    %766 = vmatpush1.msra.mxu0 %v754
    %767 = vmatprep.subr.mxu0 0.0
    %768 = vmatpush1.msra.mxu0 0.0
    %769 = vmatprep.subr.mxu0 0.0
    %770 = vmatpush1.msra.mxu0 0.0
    %771 = vmatprep.subr.mxu0 0.0
    %772 = vmatpush1.msra.mxu0 0.0
    %773 = vmatprep.subr.mxu0 0.0
    %774 = vmatpush1.msra.mxu0 0.0
    %775 = vmatprep.subr.mxu0 0.0
    %776 = vmatpush1.msra.mxu0 0.0
    %777 = vmatprep.subr.mxu0 0.0
    %778 = vmatpush1.msra.mxu0 0.0
    %779 = vmatprep.subr.mxu0 0.0
    %780 = vmatpush1.msra.mxu0 0.0
    %781 = vmatprep.subr.mxu0 0.0
    %782 = vmatpush1.msra.mxu0 0.0
    %783 = vmatprep.subr.mxu0 0.0
    %784 = vmatpush1.msra.mxu0 0.0
    %785 = vmatprep.subr.mxu0 0.0
    %786 = vmatpush1.msra.mxu0 0.0
    %787 = vmatprep.subr.mxu0 0.0
    %788 = vmatpush1.msra.mxu0 0.0
    %789 = vmatprep.subr.mxu0 0.0
    %790 = vmatpush1.msra.mxu0 0.0
    %791 = vmatprep.subr.mxu0 0.0
    %792 = vmatpush1.msra.mxu0 0.0
    %793 = vmatprep.subr.mxu0 0.0
    %794 = vmatpush1.msra.mxu0 0.0
    %795 = vmatprep.subr.mxu0 0.0
    %796 = vmatpush1.msra.mxu0 0.0
    %797 = vmatprep.subr.mxu0 0.0
    %798 = vmatpush1.msra.mxu0 0.0
    %799 = vmatprep.subr.mxu0 0.0
    %800 = vmatpush1.msra.mxu0 0.0
    %801 = vmatprep.subr.mxu0 0.0
    %802 = vmatpush1.msra.mxu0 0.0
    %803 = vmatprep.subr.mxu0 0.0
    %804 = vmatpush1.msra.mxu0 0.0
    %805 = vmatprep.subr.mxu0 0.0
    %806 = vmatpush1.msra.mxu0 0.0
    %807 = vmatprep.subr.mxu0 0.0
    %808 = vmatpush1.msra.mxu0 0.0
    %809 = vmatprep.subr.mxu0 0.0
    %810 = vmatpush1.msra.mxu0 0.0
    %811 = vmatprep.subr.mxu0 0.0
    %812 = vmatpush1.msra.mxu0 0.0
    %813 = vmatprep.subr.mxu0 0.0
    %814 = vmatpush1.msra.mxu0 0.0
    %815 = vmatprep.subr.mxu0 0.0
    %816 = vmatpush1.msra.mxu0 0.0
    %817 = vmatprep.subr.mxu0 0.0
    %818 = vmatpush1.msra.mxu0 0.0
    %819 = vmatprep.subr.mxu0 0.0
    %820 = vmatpush1.msra.mxu0 0.0
    %821 = vmatprep.subr.mxu0 0.0
    %822 = vmatpush1.msra.mxu0 0.0
    %823 = vmatprep.subr.mxu0 0.0
    %824 = vmatpush1.msra.mxu0 0.0
    %825 = vmatprep.subr.mxu0 0.0
    %826 = vmatpush1.msra.mxu0 0.0
    %827 = vmatprep.mubr.f32.mxu0 0.0
    %828 = vmatmul.mubr.f32.gmra.mrb[0].mxu0 %v758
    %v829 = vpop.f32.mrb[0].mxu0
    %v830 = vadd.f32 0.0, %v829
    %v831 = vpop.f32.mrb[0].mxu0
    %832 = vmatprep.mubr.f32.mxu0 0.0
    %833 = vmatmul.mubr.f32.gmra.mrb[0].mxu0 %v761
    %v834 = vpop.f32.mrb[0].mxu0
    %v835 = vadd.f32 0.0, %v834
    %v836 = vpop.f32.mrb[0].mxu0
    %837 = vdwg.mxu0
    %840 = vrot.lane.b32.xlu0 %v830, 16
    %v841 = vpop.permute.xlu0 %840
    %842 = vrot.lane.b32.xlu0 %v835, 16
    %v843 = vpop.permute.xlu0 %842
    %v846 = vsel %vm210, %v626, %v841
    %v847 = vsel %vm210, %v631, %v843
    %v848 = vlaneseq
    %v849 = vshrl.u32 %v848, 7
    %v850 = vsub.s32 0, %v849
    %v851 = vrot.slane %v81, %v850
    %v853 = vsel %vm350, %v846, 0
    %v856 = vsel %vm350, %v847, 0
    %858 = vmatprep.subr.mxu0 0.0
    %859 = vmatpush1.msra.mxu0 %v44
    %860 = vmatprep.subr.mxu0 0.0
    %861 = vmatpush1.msra.mxu0 %v45
    %862 = vmatprep.subr.mxu0 0.0
    %863 = vmatpush1.msra.mxu0 %v46
    %864 = vmatprep.subr.mxu0 0.0
    %865 = vmatpush1.msra.mxu0 %v47
    %866 = vmatprep.subr.mxu0 0.0
    %867 = vmatpush1.msra.mxu0 0.0
    %868 = vmatprep.subr.mxu0 0.0
    %869 = vmatpush1.msra.mxu0 0.0
    %870 = vmatprep.subr.mxu0 0.0
    %871 = vmatpush1.msra.mxu0 0.0
    %872 = vmatprep.subr.mxu0 0.0
    %873 = vmatpush1.msra.mxu0 0.0
    %874 = vmatprep.subr.mxu0 0.0
    %875 = vmatpush1.msra.mxu0 0.0
    %876 = vmatprep.subr.mxu0 0.0
    %877 = vmatpush1.msra.mxu0 0.0
    %878 = vmatprep.subr.mxu0 0.0
    %879 = vmatpush1.msra.mxu0 0.0
    %880 = vmatprep.subr.mxu0 0.0
    %881 = vmatpush1.msra.mxu0 0.0
    %882 = vmatprep.subr.mxu0 0.0
    %883 = vmatpush1.msra.mxu0 0.0
    %884 = vmatprep.subr.mxu0 0.0
    %885 = vmatpush1.msra.mxu0 0.0
    %886 = vmatprep.subr.mxu0 0.0
    %887 = vmatpush1.msra.mxu0 0.0
    %888 = vmatprep.subr.mxu0 0.0
    %889 = vmatpush1.msra.mxu0 0.0
    %890 = vmatprep.subr.mxu0 0.0
    %891 = vmatpush1.msra.mxu0 0.0
    %892 = vmatprep.subr.mxu0 0.0
    %893 = vmatpush1.msra.mxu0 0.0
    %894 = vmatprep.subr.mxu0 0.0
    %895 = vmatpush1.msra.mxu0 0.0
    %896 = vmatprep.subr.mxu0 0.0
    %897 = vmatpush1.msra.mxu0 0.0
    %898 = vmatprep.subr.mxu0 0.0
    %899 = vmatpush1.msra.mxu0 0.0
    %900 = vmatprep.subr.mxu0 0.0
    %901 = vmatpush1.msra.mxu0 0.0
    %902 = vmatprep.subr.mxu0 0.0
    %903 = vmatpush1.msra.mxu0 0.0
    %904 = vmatprep.subr.mxu0 0.0
    %905 = vmatpush1.msra.mxu0 0.0
    %906 = vmatprep.subr.mxu0 0.0
    %907 = vmatpush1.msra.mxu0 0.0
    %908 = vmatprep.subr.mxu0 0.0
    %909 = vmatpush1.msra.mxu0 0.0
    %910 = vmatprep.subr.mxu0 0.0
    %911 = vmatpush1.msra.mxu0 0.0
    %912 = vmatprep.subr.mxu0 0.0
    %913 = vmatpush1.msra.mxu0 0.0
    %914 = vmatprep.subr.mxu0 0.0
    %915 = vmatpush1.msra.mxu0 0.0
    %916 = vmatprep.subr.mxu0 0.0
    %917 = vmatpush1.msra.mxu0 0.0
    %918 = vmatprep.subr.mxu0 0.0
    %919 = vmatpush1.msra.mxu0 0.0
    %920 = vmatprep.subr.mxu0 0.0
    %921 = vmatpush1.msra.mxu0 0.0
    %922 = vmatprep.mubr.f32.mxu0 0.0
    %923 = vmatmul.mubr.f32.gmra.mrb[0].mxu0 %v853
    %v924 = vpop.f32.mrb[0].mxu0
    %v925 = vadd.f32 %v851, %v924
    %v926 = vpop.f32.mrb[0].mxu0
    %927 = vmatprep.mubr.f32.mxu0 0.0
    %928 = vmatmul.mubr.f32.gmra.mrb[0].mxu0 %v856
    %v929 = vpop.f32.mrb[0].mxu0
    %v930 = vadd.f32 %v851, %v929
    %v931 = vpop.f32.mrb[0].mxu0
    %932 = vdwg.mxu0
    %v933 = vadd.f32 %v327, %v925
    %v934 = vadd.f32 %v332, %v930
    %v935 = vsel %vm350, %v933, 0.0
    %936 = vadd.xlane.f32.xlu0 %v935
    %v937 = vpop.xlane.xlu0 %936
    %v938 = vsel %vm350, %v934, 0.0
    %939 = vadd.xlane.f32.xlu0 %v938
    %v940 = vpop.xlane.xlu0 %939
    %v941 = vrcp.pop 32.0
    %v942 = vmul.f32 %v937, %v941
    %v943 = vmul.f32 %v940, %v941
    %v944 = vsub.f32 %v933, %v942
    %v945 = vsub.f32 %v934, %v943
    %v946 = vmul.f32 %v944, %v944
    %v947 = vmul.f32 %v945, %v945
    %v948 = vsel %vm350, %v946, 0.0
    %949 = vadd.xlane.f32.xlu0 %v948
    %v950 = vpop.xlane.xlu0 %949
    %v951 = vsel %vm350, %v947, 0.0
    %952 = vadd.xlane.f32.xlu0 %v951
    %v953 = vpop.xlane.xlu0 %952
    %v954 = vmul.f32 %v950, %v941
    %v955 = vmul.f32 %v953, %v941
    %v956 = vadd.f32 %v954, 1e-12
    %v957 = vadd.f32 %v955, 1e-12
    %v958 = vrsqrt.pop %v956
    %v959 = vrsqrt.pop %v957
    %v960 = vmul.f32 %v944, %v958
    %v961 = vmul.f32 %v945, %v959
    %v962 = vlaneseq
    %v963 = vshrl.u32 %v962, 7
    %v964 = vsub.s32 0, %v963
    %v965 = vrot.slane %v82, %v964
    %v966 = vmul.f32 %v960, %v965
    %v967 = vmul.f32 %v961, %v965
    %v968 = vlaneseq
    %v969 = vshrl.u32 %v968, 7
    %v970 = vsub.s32 0, %v969
    %v971 = vrot.slane %v83, %v970
    %v972 = vadd.f32 %v966, %v971
    %v973 = vadd.f32 %v967, %v971
    %v974 = vlaneseq
    %v975 = vshrl.u32 %v974, 7
    %v976 = vsub.s32 0, %v975
    %v977 = vrot.slane %v84, %v976
    %v979 = vsel %vm350, %v972, 0
    %v982 = vsel %vm350, %v973, 0
    %984 = vmatprep.subr.mxu0 0.0
    %985 = vmatpush1.msra.mxu0 %v48
    %986 = vmatprep.subr.mxu0 0.0
    %987 = vmatpush1.msra.mxu0 %v49
    %988 = vmatprep.subr.mxu0 0.0
    %989 = vmatpush1.msra.mxu0 %v50
    %990 = vmatprep.subr.mxu0 0.0
    %991 = vmatpush1.msra.mxu0 %v51
    %992 = vmatprep.subr.mxu0 0.0
    %993 = vmatpush1.msra.mxu0 0.0
    %994 = vmatprep.subr.mxu0 0.0
    %995 = vmatpush1.msra.mxu0 0.0
    %996 = vmatprep.subr.mxu0 0.0
    %997 = vmatpush1.msra.mxu0 0.0
    %998 = vmatprep.subr.mxu0 0.0
    %999 = vmatpush1.msra.mxu0 0.0
    %1000 = vmatprep.subr.mxu0 0.0
    %1001 = vmatpush1.msra.mxu0 0.0
    %1002 = vmatprep.subr.mxu0 0.0
    %1003 = vmatpush1.msra.mxu0 0.0
    %1004 = vmatprep.subr.mxu0 0.0
    %1005 = vmatpush1.msra.mxu0 0.0
    %1006 = vmatprep.subr.mxu0 0.0
    %1007 = vmatpush1.msra.mxu0 0.0
    %1008 = vmatprep.subr.mxu0 0.0
    %1009 = vmatpush1.msra.mxu0 0.0
    %1010 = vmatprep.subr.mxu0 0.0
    %1011 = vmatpush1.msra.mxu0 0.0
    %1012 = vmatprep.subr.mxu0 0.0
    %1013 = vmatpush1.msra.mxu0 0.0
    %1014 = vmatprep.subr.mxu0 0.0
    %1015 = vmatpush1.msra.mxu0 0.0
    %1016 = vmatprep.subr.mxu0 0.0
    %1017 = vmatpush1.msra.mxu0 0.0
    %1018 = vmatprep.subr.mxu0 0.0
    %1019 = vmatpush1.msra.mxu0 0.0
    %1020 = vmatprep.subr.mxu0 0.0
    %1021 = vmatpush1.msra.mxu0 0.0
    %1022 = vmatprep.subr.mxu0 0.0
    %1023 = vmatpush1.msra.mxu0 0.0
    %1024 = vmatprep.subr.mxu0 0.0
    %1025 = vmatpush1.msra.mxu0 0.0
    %1026 = vmatprep.subr.mxu0 0.0
    %1027 = vmatpush1.msra.mxu0 0.0
    %1028 = vmatprep.subr.mxu0 0.0
    %1029 = vmatpush1.msra.mxu0 0.0
    %1030 = vmatprep.subr.mxu0 0.0
    %1031 = vmatpush1.msra.mxu0 0.0
    %1032 = vmatprep.subr.mxu0 0.0
    %1033 = vmatpush1.msra.mxu0 0.0
    %1034 = vmatprep.subr.mxu0 0.0
    %1035 = vmatpush1.msra.mxu0 0.0
    %1036 = vmatprep.subr.mxu0 0.0
    %1037 = vmatpush1.msra.mxu0 0.0
    %1038 = vmatprep.subr.mxu0 0.0
    %1039 = vmatpush1.msra.mxu0 0.0
    %1040 = vmatprep.subr.mxu0 0.0
    %1041 = vmatpush1.msra.mxu0 0.0
    %1042 = vmatprep.subr.mxu0 0.0
    %1043 = vmatpush1.msra.mxu0 0.0
    %1044 = vmatprep.subr.mxu0 0.0
    %1045 = vmatpush1.msra.mxu0 0.0
    %1046 = vmatprep.subr.mxu0 0.0
    %1047 = vmatpush1.msra.mxu0 0.0
    %1048 = vmatprep.mubr.f32.mxu0 0.0
    %1049 = vmatmul.mubr.f32.gmra.mrb[0].mxu0 %v979
    %v1050 = vpop.f32.mrb[0].mxu0
    %v1051 = vadd.f32 %v977, %v1050
    %v1052 = vpop.f32.mrb[0].mxu0
    %1053 = vmatprep.mubr.f32.mxu0 0.0
    %1054 = vmatmul.mubr.f32.gmra.mrb[0].mxu0 %v982
    %v1055 = vpop.f32.mrb[0].mxu0
    %v1056 = vadd.f32 %v977, %v1055
    %v1057 = vpop.f32.mrb[0].mxu0
    %1058 = vdwg.mxu0
    %v1059 = vmul.f32 %v1051, 0.5
    %v1060 = vmul.f32 %v1056, 0.5
    %v1061 = vmul.f32 %v1051, 0.044715
    %v1062 = vmul.f32 %v1056, 0.044715
    %v1063 = vmul.f32 %v1061, %v1051
    %v1064 = vmul.f32 %v1062, %v1056
    %v1065 = vmul.f32 %v1063, %v1051
    %v1066 = vmul.f32 %v1064, %v1056
    %v1067 = vadd.f32 %v1051, %v1065
    %v1068 = vadd.f32 %v1056, %v1066
    %v1069 = vmul.f32 %v1067, 0.7978846
    %v1070 = vmul.f32 %v1068, 0.7978846
    %v1071 = vtanh.pop %v1069
    %v1072 = vtanh.pop %v1070
    %v1073 = vadd.f32 %v1071, 1.0
    %v1074 = vadd.f32 %v1072, 1.0
    %v1075 = vmul.f32 %v1059, %v1073
    %v1076 = vmul.f32 %v1060, %v1074
    %v1077 = vlaneseq
    %v1078 = vshrl.u32 %v1077, 7
    %v1079 = vsub.s32 0, %v1078
    %v1080 = vrot.slane %v85, %v1079
    %v1082 = vsel %vm110, %v1075, 0
    %v1085 = vsel %vm110, %v1076, 0
    %1087 = vmatprep.subr.mxu0 0.0
    %1088 = vmatpush1.msra.mxu0 %v52
    %1089 = vmatprep.subr.mxu0 0.0
    %1090 = vmatpush1.msra.mxu0 %v53
    %1091 = vmatprep.subr.mxu0 0.0
    %1092 = vmatpush1.msra.mxu0 %v54
    %1093 = vmatprep.subr.mxu0 0.0
    %1094 = vmatpush1.msra.mxu0 %v55
    %1095 = vmatprep.subr.mxu0 0.0
    %1096 = vmatpush1.msra.mxu0 %v56
    %1097 = vmatprep.subr.mxu0 0.0
    %1098 = vmatpush1.msra.mxu0 %v57
    %1099 = vmatprep.subr.mxu0 0.0
    %1100 = vmatpush1.msra.mxu0 %v58
    %1101 = vmatprep.subr.mxu0 0.0
    %1102 = vmatpush1.msra.mxu0 %v59
    %1103 = vmatprep.subr.mxu0 0.0
    %1104 = vmatpush1.msra.mxu0 0.0
    %1105 = vmatprep.subr.mxu0 0.0
    %1106 = vmatpush1.msra.mxu0 0.0
    %1107 = vmatprep.subr.mxu0 0.0
    %1108 = vmatpush1.msra.mxu0 0.0
    %1109 = vmatprep.subr.mxu0 0.0
    %1110 = vmatpush1.msra.mxu0 0.0
    %1111 = vmatprep.subr.mxu0 0.0
    %1112 = vmatpush1.msra.mxu0 0.0
    %1113 = vmatprep.subr.mxu0 0.0
    %1114 = vmatpush1.msra.mxu0 0.0
    %1115 = vmatprep.subr.mxu0 0.0
    %1116 = vmatpush1.msra.mxu0 0.0
    %1117 = vmatprep.subr.mxu0 0.0
    %1118 = vmatpush1.msra.mxu0 0.0
    %1119 = vmatprep.subr.mxu0 0.0
    %1120 = vmatpush1.msra.mxu0 0.0
    %1121 = vmatprep.subr.mxu0 0.0
    %1122 = vmatpush1.msra.mxu0 0.0
    %1123 = vmatprep.subr.mxu0 0.0
    %1124 = vmatpush1.msra.mxu0 0.0
    %1125 = vmatprep.subr.mxu0 0.0
    %1126 = vmatpush1.msra.mxu0 0.0
    %1127 = vmatprep.subr.mxu0 0.0
    %1128 = vmatpush1.msra.mxu0 0.0
    %1129 = vmatprep.subr.mxu0 0.0
    %1130 = vmatpush1.msra.mxu0 0.0
    %1131 = vmatprep.subr.mxu0 0.0
    %1132 = vmatpush1.msra.mxu0 0.0
    %1133 = vmatprep.subr.mxu0 0.0
    %1134 = vmatpush1.msra.mxu0 0.0
    %1135 = vmatprep.subr.mxu0 0.0
    %1136 = vmatpush1.msra.mxu0 0.0
    %1137 = vmatprep.subr.mxu0 0.0
    %1138 = vmatpush1.msra.mxu0 0.0
    %1139 = vmatprep.subr.mxu0 0.0
    %1140 = vmatpush1.msra.mxu0 0.0
    %1141 = vmatprep.subr.mxu0 0.0
    %1142 = vmatpush1.msra.mxu0 0.0
    %1143 = vmatprep.subr.mxu0 0.0
    %1144 = vmatpush1.msra.mxu0 0.0
    %1145 = vmatprep.subr.mxu0 0.0
    %1146 = vmatpush1.msra.mxu0 0.0
    %1147 = vmatprep.subr.mxu0 0.0
    %1148 = vmatpush1.msra.mxu0 0.0
    %1149 = vmatprep.subr.mxu0 0.0
    %1150 = vmatpush1.msra.mxu0 0.0
    %1151 = vmatprep.mubr.f32.mxu0 0.0
    %1152 = vmatmul.mubr.f32.gmra.mrb[0].mxu0 %v1082
    %v1153 = vpop.f32.mrb[0].mxu0
    %v1154 = vadd.f32 %v1080, %v1153
    %v1155 = vpop.f32.mrb[0].mxu0
    %1156 = vmatprep.mubr.f32.mxu0 0.0
    %1157 = vmatmul.mubr.f32.gmra.mrb[0].mxu0 %v1085
    %v1158 = vpop.f32.mrb[0].mxu0
    %v1159 = vadd.f32 %v1080, %v1158
    %v1160 = vpop.f32.mrb[0].mxu0
    %1161 = vdwg.mxu0
    %v1162 = vadd.f32 %v972, %v1154
    %v1163 = vadd.f32 %v973, %v1159
    %v1164 = vsel %vm350, %v1162, 0.0
    %1165 = vadd.xlane.f32.xlu0 %v1164
    %v1166 = vpop.xlane.xlu0 %1165
    %v1167 = vsel %vm350, %v1163, 0.0
    %1168 = vadd.xlane.f32.xlu0 %v1167
    %v1169 = vpop.xlane.xlu0 %1168
    %v1170 = vmul.f32 %v1166, %v941
    %v1171 = vmul.f32 %v1169, %v941
    %v1172 = vsub.f32 %v1162, %v1170
    %v1173 = vsub.f32 %v1163, %v1171
    %v1174 = vmul.f32 %v1172, %v1172
    %v1175 = vmul.f32 %v1173, %v1173
    %v1176 = vsel %vm350, %v1174, 0.0
    %1177 = vadd.xlane.f32.xlu0 %v1176
    %v1178 = vpop.xlane.xlu0 %1177
    %v1179 = vsel %vm350, %v1175, 0.0
    %1180 = vadd.xlane.f32.xlu0 %v1179
    %v1181 = vpop.xlane.xlu0 %1180
    %v1182 = vmul.f32 %v1178, %v941
    %v1183 = vmul.f32 %v1181, %v941
    %v1184 = vadd.f32 %v1182, 1e-12
    %v1185 = vadd.f32 %v1183, 1e-12
    %v1186 = vrsqrt.pop %v1184
    %v1187 = vrsqrt.pop %v1185
    %v1188 = vmul.f32 %v1172, %v1186
    %v1189 = vmul.f32 %v1173, %v1187
    %v1190 = vlaneseq
    %v1191 = vshrl.u32 %v1190, 7
    %v1192 = vsub.s32 0, %v1191
    %v1193 = vrot.slane %v86, %v1192
    %v1194 = vmul.f32 %v1188, %v1193
    %v1195 = vmul.f32 %v1189, %v1193
    %v1196 = vlaneseq
    %v1197 = vshrl.u32 %v1196, 7
    %v1198 = vsub.s32 0, %v1197
    %v1199 = vrot.slane %v87, %v1198
    %v1200 = vadd.f32 %v1194, %v1199
    %v1201 = vadd.f32 %v1195, %v1199
    %v1203 = vsel %vm350, %v1200, 0
    %v1206 = vsel %vm350, %v1201, 0
    %1208 = vmatprep.subr.mxu0 0.0
    %1209 = vmatpush1.msra.mxu0 %v40
    %1210 = vmatprep.subr.mxu0 0.0
    %1211 = vmatpush1.msra.mxu0 %v41
    %1212 = vmatprep.subr.mxu0 0.0
    %1213 = vmatpush1.msra.mxu0 %v42
    %1214 = vmatprep.subr.mxu0 0.0
    %1215 = vmatpush1.msra.mxu0 %v43
    %1216 = vmatprep.subr.mxu0 0.0
    %1217 = vmatpush1.msra.mxu0 0.0
    %1218 = vmatprep.subr.mxu0 0.0
    %1219 = vmatpush1.msra.mxu0 0.0
    %1220 = vmatprep.subr.mxu0 0.0
    %1221 = vmatpush1.msra.mxu0 0.0
    %1222 = vmatprep.subr.mxu0 0.0
    %1223 = vmatpush1.msra.mxu0 0.0
    %1224 = vmatprep.subr.mxu0 0.0
    %1225 = vmatpush1.msra.mxu0 0.0
    %1226 = vmatprep.subr.mxu0 0.0
    %1227 = vmatpush1.msra.mxu0 0.0
    %1228 = vmatprep.subr.mxu0 0.0
    %1229 = vmatpush1.msra.mxu0 0.0
    %1230 = vmatprep.subr.mxu0 0.0
    %1231 = vmatpush1.msra.mxu0 0.0
    %1232 = vmatprep.subr.mxu0 0.0
    %1233 = vmatpush1.msra.mxu0 0.0
    %1234 = vmatprep.subr.mxu0 0.0
    %1235 = vmatpush1.msra.mxu0 0.0
    %1236 = vmatprep.subr.mxu0 0.0
    %1237 = vmatpush1.msra.mxu0 0.0
    %1238 = vmatprep.subr.mxu0 0.0
    %1239 = vmatpush1.msra.mxu0 0.0
    %1240 = vmatprep.subr.mxu0 0.0
    %1241 = vmatpush1.msra.mxu0 0.0
    %1242 = vmatprep.subr.mxu0 0.0
    %1243 = vmatpush1.msra.mxu0 0.0
    %1244 = vmatprep.subr.mxu0 0.0
    %1245 = vmatpush1.msra.mxu0 0.0
    %1246 = vmatprep.subr.mxu0 0.0
    %1247 = vmatpush1.msra.mxu0 0.0
    %1248 = vmatprep.subr.mxu0 0.0
    %1249 = vmatpush1.msra.mxu0 0.0
    %1250 = vmatprep.subr.mxu0 0.0
    %1251 = vmatpush1.msra.mxu0 0.0
    %1252 = vmatprep.subr.mxu0 0.0
    %1253 = vmatpush1.msra.mxu0 0.0
    %1254 = vmatprep.subr.mxu0 0.0
    %1255 = vmatpush1.msra.mxu0 0.0
    %1256 = vmatprep.subr.mxu0 0.0
    %1257 = vmatpush1.msra.mxu0 0.0
    %1258 = vmatprep.subr.mxu0 0.0
    %1259 = vmatpush1.msra.mxu0 0.0
    %1260 = vmatprep.subr.mxu0 0.0
    %1261 = vmatpush1.msra.mxu0 0.0
    %1262 = vmatprep.subr.mxu0 0.0
    %1263 = vmatpush1.msra.mxu0 0.0
    %1264 = vmatprep.subr.mxu0 0.0
    %1265 = vmatpush1.msra.mxu0 0.0
    %1266 = vmatprep.subr.mxu0 0.0
    %1267 = vmatpush1.msra.mxu0 0.0
    %1268 = vmatprep.subr.mxu0 0.0
    %1269 = vmatpush1.msra.mxu0 0.0
    %1270 = vmatprep.subr.mxu0 0.0
    %1271 = vmatpush1.msra.mxu0 0.0
    %1272 = vmatprep.mubr.f32.mxu0 0.0
    %1273 = vmatmul.mubr.f32.gmra.mrb[0].mxu0 %v1203
    %v1274 = vpop.f32.mrb[0].mxu0
    %v1275 = vadd.f32 %v349, %v1274
    %v1276 = vpop.f32.mrb[0].mxu0
    %1277 = vmatprep.mubr.f32.mxu0 0.0
    %1278 = vmatmul.mubr.f32.gmra.mrb[0].mxu0 %v1206
    %v1279 = vpop.f32.mrb[0].mxu0
    %v1280 = vadd.f32 %v349, %v1279
    %v1281 = vpop.f32.mrb[0].mxu0
    %1282 = vdwg.mxu0
    %1285 = vrot.lane.b32.xlu0 %v1275, 96
    %v1286 = vpop.permute.xlu0 %1285
    %1287 = vrot.lane.b32.xlu0 %v1280, 96
    %v1288 = vpop.permute.xlu0 %1287
    %v1289 = vsel %vm210, %v1275, 0
    %v1291 = vsel %vm210, %v1280, 0
    %v1293 = vsel %vm210, %v1286, 0
    %v1295 = vsel %vm210, %v1288, 0
    %1297 = vmatprep.subr.mxu0 0.0
    %1298 = vmatpush1.xpose.msra.mxu0 %v1293
    %1299 = vmatprep.subr.mxu0 0.0
    %1300 = vmatpush1.xpose.msra.mxu0 %v1295
    %1301 = vmatprep.subr.mxu0 0.0
    %1302 = vmatpush1.xpose.msra.mxu0 0.0
    %1303 = vmatprep.subr.mxu0 0.0
    %1304 = vmatpush1.xpose.msra.mxu0 0.0
    %1305 = vmatprep.subr.mxu0 0.0
    %1306 = vmatpush1.xpose.msra.mxu0 0.0
    %1307 = vmatprep.subr.mxu0 0.0
    %1308 = vmatpush1.xpose.msra.mxu0 0.0
    %1309 = vmatprep.subr.mxu0 0.0
    %1310 = vmatpush1.xpose.msra.mxu0 0.0
    %1311 = vmatprep.subr.mxu0 0.0
    %1312 = vmatpush1.xpose.msra.mxu0 0.0
    %1313 = vmatprep.subr.mxu0 0.0
    %1314 = vmatpush1.xpose.msra.mxu0 0.0
    %1315 = vmatprep.subr.mxu0 0.0
    %1316 = vmatpush1.xpose.msra.mxu0 0.0
    %1317 = vmatprep.subr.mxu0 0.0
    %1318 = vmatpush1.xpose.msra.mxu0 0.0
    %1319 = vmatprep.subr.mxu0 0.0
    %1320 = vmatpush1.xpose.msra.mxu0 0.0
    %1321 = vmatprep.subr.mxu0 0.0
    %1322 = vmatpush1.xpose.msra.mxu0 0.0
    %1323 = vmatprep.subr.mxu0 0.0
    %1324 = vmatpush1.xpose.msra.mxu0 0.0
    %1325 = vmatprep.subr.mxu0 0.0
    %1326 = vmatpush1.xpose.msra.mxu0 0.0
    %1327 = vmatprep.subr.mxu0 0.0
    %1328 = vmatpush1.xpose.msra.mxu0 0.0
    %1329 = vmatprep.subr.mxu0 0.0
    %1330 = vmatpush1.xpose.msra.mxu0 0.0
    %1331 = vmatprep.subr.mxu0 0.0
    %1332 = vmatpush1.xpose.msra.mxu0 0.0
    %1333 = vmatprep.subr.mxu0 0.0
    %1334 = vmatpush1.xpose.msra.mxu0 0.0
    %1335 = vmatprep.subr.mxu0 0.0
    %1336 = vmatpush1.xpose.msra.mxu0 0.0
    %1337 = vmatprep.subr.mxu0 0.0
    %1338 = vmatpush1.xpose.msra.mxu0 0.0
    %1339 = vmatprep.subr.mxu0 0.0
    %1340 = vmatpush1.xpose.msra.mxu0 0.0
    %1341 = vmatprep.subr.mxu0 0.0
    %1342 = vmatpush1.xpose.msra.mxu0 0.0
    %1343 = vmatprep.subr.mxu0 0.0
    %1344 = vmatpush1.xpose.msra.mxu0 0.0
    %1345 = vmatprep.subr.mxu0 0.0
    %1346 = vmatpush1.xpose.msra.mxu0 0.0
    %1347 = vmatprep.subr.mxu0 0.0
    %1348 = vmatpush1.xpose.msra.mxu0 0.0
    %1349 = vmatprep.subr.mxu0 0.0
    %1350 = vmatpush1.xpose.msra.mxu0 0.0
    %1351 = vmatprep.subr.mxu0 0.0
    %1352 = vmatpush1.xpose.msra.mxu0 0.0
    %1353 = vmatprep.subr.mxu0 0.0
    %1354 = vmatpush1.xpose.msra.mxu0 0.0
    %1355 = vmatprep.subr.mxu0 0.0
    %1356 = vmatpush1.xpose.msra.mxu0 0.0
    %1357 = vmatprep.subr.mxu0 0.0
    %1358 = vmatpush1.xpose.msra.mxu0 0.0
    %1359 = vmatprep.subr.mxu0 0.0
    %1360 = vmatpush1.xpose.msra.mxu0 0.0
    %1361 = vmatprep.mubr.f32.mxu0 0.0
    %1362 = vmatmul.mubr.f32.gmra.mrb[0].mxu0 %v1289
    %v1363 = vpop.f32.mrb[0].mxu0
    %v1364 = vadd.f32 0.0, %v1363
    %v1365 = vpop.f32.mrb[0].mxu0
    %1366 = vmatprep.mubr.f32.mxu0 0.0
    %1367 = vmatmul.mubr.f32.gmra.mrb[0].mxu0 %v1291
    %v1368 = vpop.f32.mrb[0].mxu0
    %v1369 = vadd.f32 0.0, %v1368
    %v1370 = vpop.f32.mrb[0].mxu0
    %1371 = vdwg.mxu0
    %v1372 = vmul.f32 %v1364, 0.25
    %v1373 = vmul.f32 %v1369, 0.25
    %v1374 = vadd.f32 %v1372, %v344
    %v1375 = vadd.f32 %v1373, %v345
    %v1376 = vsel %vm210, %v1374, -inf
    %1377 = vmax.xlane.f32.xlu0 %v1376
    %v1378 = vpop.xlane.xlu0 %1377
    %v1379 = vsel %vm210, %v1375, -inf
    %1380 = vmax.xlane.f32.xlu0 %v1379
    %v1381 = vpop.xlane.xlu0 %1380
    %v1382 = vsub.f32 %v1374, %v1378
    %v1383 = vsub.f32 %v1375, %v1381
    %v1384 = vmul.f32 %v1382, 1.442695
    %v1385 = vpow.pop %v1384
    %v1386 = vmul.f32 %v1383, 1.442695
    %v1387 = vpow.pop %v1386
    %v1388 = vsel %vm210, %v1385, 0.0
    %1389 = vadd.xlane.f32.xlu0 %v1388
    %v1390 = vpop.xlane.xlu0 %1389
    %v1391 = vsel %vm210, %v1387, 0.0
    %1392 = vadd.xlane.f32.xlu0 %v1391
    %v1393 = vpop.xlane.xlu0 %1392
    %v1394 = vrcp.pop %v1390
    %v1395 = vrcp.pop %v1393
    %v1396 = vmul.f32 %v1385, %v1394
    %v1397 = vmul.f32 %v1387, %v1395
    %1398 = vrot.lane.b32.xlu0 %v1275, 64
    %v1399 = vpop.permute.xlu0 %1398
    %1400 = vrot.lane.b32.xlu0 %v1280, 64
    %v1401 = vpop.permute.xlu0 %1400
    %v1405 = vsel %vm210, %v1396, 0
    %v1408 = vsel %vm210, %v1397, 0
    %1410 = vmatprep.subr.mxu0 0.0
    %1411 = vmatpush1.msra.mxu0 %v1399
    %1412 = vmatprep.subr.mxu0 0.0
    %1413 = vmatpush1.msra.mxu0 %v1401
    %1414 = vmatprep.subr.mxu0 0.0
    %1415 = vmatpush1.msra.mxu0 0.0
    %1416 = vmatprep.subr.mxu0 0.0
    %1417 = vmatpush1.msra.mxu0 0.0
    %1418 = vmatprep.subr.mxu0 0.0
    %1419 = vmatpush1.msra.mxu0 0.0
    %1420 = vmatprep.subr.mxu0 0.0
    %1421 = vmatpush1.msra.mxu0 0.0
    %1422 = vmatprep.subr.mxu0 0.0
    %1423 = vmatpush1.msra.mxu0 0.0
    %1424 = vmatprep.subr.mxu0 0.0
    %1425 = vmatpush1.msra.mxu0 0.0
    %1426 = vmatprep.subr.mxu0 0.0
    %1427 = vmatpush1.msra.mxu0 0.0
    %1428 = vmatprep.subr.mxu0 0.0
    %1429 = vmatpush1.msra.mxu0 0.0
    %1430 = vmatprep.subr.mxu0 0.0
    %1431 = vmatpush1.msra.mxu0 0.0
    %1432 = vmatprep.subr.mxu0 0.0
    %1433 = vmatpush1.msra.mxu0 0.0
    %1434 = vmatprep.subr.mxu0 0.0
    %1435 = vmatpush1.msra.mxu0 0.0
    %1436 = vmatprep.subr.mxu0 0.0
    %1437 = vmatpush1.msra.mxu0 0.0
    %1438 = vmatprep.subr.mxu0 0.0
    %1439 = vmatpush1.msra.mxu0 0.0
    %1440 = vmatprep.subr.mxu0 0.0
    %1441 = vmatpush1.msra.mxu0 0.0
    %1442 = vmatprep.subr.mxu0 0.0
    %1443 = vmatpush1.msra.mxu0 0.0
    %1444 = vmatprep.subr.mxu0 0.0
    %1445 = vmatpush1.msra.mxu0 0.0
    %1446 = vmatprep.subr.mxu0 0.0
    %1447 = vmatpush1.msra.mxu0 0.0
    %1448 = vmatprep.subr.mxu0 0.0
    %1449 = vmatpush1.msra.mxu0 0.0
    %1450 = vmatprep.subr.mxu0 0.0
    %1451 = vmatpush1.msra.mxu0 0.0
    %1452 = vmatprep.subr.mxu0 0.0
    %1453 = vmatpush1.msra.mxu0 0.0
    %1454 = vmatprep.subr.mxu0 0.0
    %1455 = vmatpush1.msra.mxu0 0.0
    %1456 = vmatprep.subr.mxu0 0.0
    %1457 = vmatpush1.msra.mxu0 0.0
    %1458 = vmatprep.subr.mxu0 0.0
    %1459 = vmatpush1.msra.mxu0 0.0
    %1460 = vmatprep.subr.mxu0 0.0
    %1461 = vmatpush1.msra.mxu0 0.0
    %1462 = vmatprep.subr.mxu0 0.0
    %1463 = vmatpush1.msra.mxu0 0.0
    %1464 = vmatprep.subr.mxu0 0.0
    %1465 = vmatpush1.msra.mxu0 0.0
    %1466 = vmatprep.subr.mxu0 0.0
    %1467 = vmatpush1.msra.mxu0 0.0
    %1468 = vmatprep.subr.mxu0 0.0
    %1469 = vmatpush1.msra.mxu0 0.0
    %1470 = vmatprep.subr.mxu0 0.0
    %1471 = vmatpush1.msra.mxu0 0.0
    %1472 = vmatprep.subr.mxu0 0.0
    %1473 = vmatpush1.msra.mxu0 0.0
    %1474 = vmatprep.mubr.f32.mxu0 0.0
    %1475 = vmatmul.mubr.f32.gmra.mrb[0].mxu0 %v1405
    %v1476 = vpop.f32.mrb[0].mxu0
    %v1477 = vadd.f32 0.0, %v1476
    %v1478 = vpop.f32.mrb[0].mxu0
    %1479 = vmatprep.mubr.f32.mxu0 0.0
    %1480 = vmatmul.mubr.f32.gmra.mrb[0].mxu0 %v1408
    %v1481 = vpop.f32.mrb[0].mxu0
    %v1482 = vadd.f32 0.0, %v1481
    %v1483 = vpop.f32.mrb[0].mxu0
    %1484 = vdwg.mxu0
    %1485 = vrot.lane.b32.xlu0 %v1275, 112
    %v1486 = vpop.permute.xlu0 %1485
    %1487 = vrot.lane.b32.xlu0 %v1280, 112
    %v1488 = vpop.permute.xlu0 %1487
    %1489 = vrot.lane.b32.xlu0 %v1275, 80
    %v1490 = vpop.permute.xlu0 %1489
    %1491 = vrot.lane.b32.xlu0 %v1280, 80
    %v1492 = vpop.permute.xlu0 %1491
    %v1493 = vsel %vm210, %v1486, 0
    %v1495 = vsel %vm210, %v1488, 0
    %v1497 = vsel %vm210, %v1490, 0
    %v1499 = vsel %vm210, %v1492, 0
    %1501 = vmatprep.subr.mxu0 0.0
    %1502 = vmatpush1.xpose.msra.mxu0 %v1497
    %1503 = vmatprep.subr.mxu0 0.0
    %1504 = vmatpush1.xpose.msra.mxu0 %v1499
    %1505 = vmatprep.subr.mxu0 0.0
    %1506 = vmatpush1.xpose.msra.mxu0 0.0
    %1507 = vmatprep.subr.mxu0 0.0
    %1508 = vmatpush1.xpose.msra.mxu0 0.0
    %1509 = vmatprep.subr.mxu0 0.0
    %1510 = vmatpush1.xpose.msra.mxu0 0.0
    %1511 = vmatprep.subr.mxu0 0.0
    %1512 = vmatpush1.xpose.msra.mxu0 0.0
    %1513 = vmatprep.subr.mxu0 0.0
    %1514 = vmatpush1.xpose.msra.mxu0 0.0
    %1515 = vmatprep.subr.mxu0 0.0
    %1516 = vmatpush1.xpose.msra.mxu0 0.0
    %1517 = vmatprep.subr.mxu0 0.0
    %1518 = vmatpush1.xpose.msra.mxu0 0.0
    %1519 = vmatprep.subr.mxu0 0.0
    %1520 = vmatpush1.xpose.msra.mxu0 0.0
    %1521 = vmatprep.subr.mxu0 0.0
    %1522 = vmatpush1.xpose.msra.mxu0 0.0
    %1523 = vmatprep.subr.mxu0 0.0
    %1524 = vmatpush1.xpose.msra.mxu0 0.0
    %1525 = vmatprep.subr.mxu0 0.0
    %1526 = vmatpush1.xpose.msra.mxu0 0.0
    %1527 = vmatprep.subr.mxu0 0.0
    %1528 = vmatpush1.xpose.msra.mxu0 0.0
    %1529 = vmatprep.subr.mxu0 0.0
    %1530 = vmatpush1.xpose.msra.mxu0 0.0
    %1531 = vmatprep.subr.mxu0 0.0
    %1532 = vmatpush1.xpose.msra.mxu0 0.0
    %1533 = vmatprep.subr.mxu0 0.0
    %1534 = vmatpush1.xpose.msra.mxu0 0.0
    %1535 = vmatprep.subr.mxu0 0.0
    %1536 = vmatpush1.xpose.msra.mxu0 0.0
    %1537 = vmatprep.subr.mxu0 0.0
    %1538 = vmatpush1.xpose.msra.mxu0 0.0
    %1539 = vmatprep.subr.mxu0 0.0
    %1540 = vmatpush1.xpose.msra.mxu0 0.0
    %1541 = vmatprep.subr.mxu0 0.0
    %1542 = vmatpush1.xpose.msra.mxu0 0.0
    %1543 = vmatprep.subr.mxu0 0.0
    %1544 = vmatpush1.xpose.msra.mxu0 0.0
    %1545 = vmatprep.subr.mxu0 0.0
    %1546 = vmatpush1.xpose.msra.mxu0 0.0
    %1547 = vmatprep.subr.mxu0 0.0
    %1548 = vmatpush1.xpose.msra.mxu0 0.0
    %1549 = vmatprep.subr.mxu0 0.0
    %1550 = vmatpush1.xpose.msra.mxu0 0.0
    %1551 = vmatprep.subr.mxu0 0.0
    %1552 = vmatpush1.xpose.msra.mxu0 0.0
    %1553 = vmatprep.subr.mxu0 0.0
    %1554 = vmatpush1.xpose.msra.mxu0 0.0
    %1555 = vmatprep.subr.mxu0 0.0
    %1556 = vmatpush1.xpose.msra.mxu0 0.0
    %1557 = vmatprep.subr.mxu0 0.0
    %1558 = vmatpush1.xpose.msra.mxu0 0.0
    %1559 = vmatprep.subr.mxu0 0.0
    %1560 = vmatpush1.xpose.msra.mxu0 0.0
    %1561 = vmatprep.subr.mxu0 0.0
    %1562 = vmatpush1.xpose.msra.mxu0 0.0
    %1563 = vmatprep.subr.mxu0 0.0
    %1564 = vmatpush1.xpose.msra.mxu0 0.0
    %1565 = vmatprep.mubr.f32.mxu0 0.0
    %1566 = vmatmul.mubr.f32.gmra.mrb[0].mxu0 %v1493
    %v1567 = vpop.f32.mrb[0].mxu0
    %v1568 = vadd.f32 0.0, %v1567
    %v1569 = vpop.f32.mrb[0].mxu0
    %1570 = vmatprep.mubr.f32.mxu0 0.0
    %1571 = vmatmul.mubr.f32.gmra.mrb[0].mxu0 %v1495
    %v1572 = vpop.f32.mrb[0].mxu0
    %v1573 = vadd.f32 0.0, %v1572
    %v1574 = vpop.f32.mrb[0].mxu0
    %1575 = vdwg.mxu0
    %v1576 = vmul.f32 %v1568, 0.25
    %v1577 = vmul.f32 %v1573, 0.25
    %v1578 = vadd.f32 %v1576, %v344
    %v1579 = vadd.f32 %v1577, %v345
    %v1580 = vsel %vm210, %v1578, -inf
    %1581 = vmax.xlane.f32.xlu0 %v1580
    %v1582 = vpop.xlane.xlu0 %1581
    %v1583 = vsel %vm210, %v1579, -inf
    %1584 = vmax.xlane.f32.xlu0 %v1583
    %v1585 = vpop.xlane.xlu0 %1584
    %v1586 = vsub.f32 %v1578, %v1582
    %v1587 = vsub.f32 %v1579, %v1585
    %v1588 = vmul.f32 %v1586, 1.442695
    %v1589 = vpow.pop %v1588
    %v1590 = vmul.f32 %v1587, 1.442695
    %v1591 = vpow.pop %v1590
    %v1592 = vsel %vm210, %v1589, 0.0
    %1593 = vadd.xlane.f32.xlu0 %v1592
    %v1594 = vpop.xlane.xlu0 %1593
    %v1595 = vsel %vm210, %v1591, 0.0
    %1596 = vadd.xlane.f32.xlu0 %v1595
    %v1597 = vpop.xlane.xlu0 %1596
    %v1598 = vrcp.pop %v1594
    %v1599 = vrcp.pop %v1597
    %v1600 = vmul.f32 %v1589, %v1598
    %v1601 = vmul.f32 %v1591, %v1599
    %1602 = vrot.lane.b32.xlu0 %v1275, 48
    %v1603 = vpop.permute.xlu0 %1602
    %1604 = vrot.lane.b32.xlu0 %v1280, 48
    %v1605 = vpop.permute.xlu0 %1604
    %v1609 = vsel %vm210, %v1600, 0
    %v1612 = vsel %vm210, %v1601, 0
    %1614 = vmatprep.subr.mxu0 0.0
    %1615 = vmatpush1.msra.mxu0 %v1603
    %1616 = vmatprep.subr.mxu0 0.0
    %1617 = vmatpush1.msra.mxu0 %v1605
    %1618 = vmatprep.subr.mxu0 0.0
    %1619 = vmatpush1.msra.mxu0 0.0
    %1620 = vmatprep.subr.mxu0 0.0
    %1621 = vmatpush1.msra.mxu0 0.0
    %1622 = vmatprep.subr.mxu0 0.0
    %1623 = vmatpush1.msra.mxu0 0.0
    %1624 = vmatprep.subr.mxu0 0.0
    %1625 = vmatpush1.msra.mxu0 0.0
    %1626 = vmatprep.subr.mxu0 0.0
    %1627 = vmatpush1.msra.mxu0 0.0
    %1628 = vmatprep.subr.mxu0 0.0
    %1629 = vmatpush1.msra.mxu0 0.0
    %1630 = vmatprep.subr.mxu0 0.0
    %1631 = vmatpush1.msra.mxu0 0.0
    %1632 = vmatprep.subr.mxu0 0.0
    %1633 = vmatpush1.msra.mxu0 0.0
    %1634 = vmatprep.subr.mxu0 0.0
    %1635 = vmatpush1.msra.mxu0 0.0
    %1636 = vmatprep.subr.mxu0 0.0
    %1637 = vmatpush1.msra.mxu0 0.0
    %1638 = vmatprep.subr.mxu0 0.0
    %1639 = vmatpush1.msra.mxu0 0.0
    %1640 = vmatprep.subr.mxu0 0.0
    %1641 = vmatpush1.msra.mxu0 0.0
    %1642 = vmatprep.subr.mxu0 0.0
    %1643 = vmatpush1.msra.mxu0 0.0
    %1644 = vmatprep.subr.mxu0 0.0
    %1645 = vmatpush1.msra.mxu0 0.0
    %1646 = vmatprep.subr.mxu0 0.0
    %1647 = vmatpush1.msra.mxu0 0.0
    %1648 = vmatprep.subr.mxu0 0.0
    %1649 = vmatpush1.msra.mxu0 0.0
    %1650 = vmatprep.subr.mxu0 0.0
    %1651 = vmatpush1.msra.mxu0 0.0
    %1652 = vmatprep.subr.mxu0 0.0
    %1653 = vmatpush1.msra.mxu0 0.0
    %1654 = vmatprep.subr.mxu0 0.0
    %1655 = vmatpush1.msra.mxu0 0.0
    %1656 = vmatprep.subr.mxu0 0.0
    %1657 = vmatpush1.msra.mxu0 0.0
    %1658 = vmatprep.subr.mxu0 0.0
    %1659 = vmatpush1.msra.mxu0 0.0
    %1660 = vmatprep.subr.mxu0 0.0
    %1661 = vmatpush1.msra.mxu0 0.0
    %1662 = vmatprep.subr.mxu0 0.0
    %1663 = vmatpush1.msra.mxu0 0.0
    %1664 = vmatprep.subr.mxu0 0.0
    %1665 = vmatpush1.msra.mxu0 0.0
    %1666 = vmatprep.subr.mxu0 0.0
    %1667 = vmatpush1.msra.mxu0 0.0
    %1668 = vmatprep.subr.mxu0 0.0
    %1669 = vmatpush1.msra.mxu0 0.0
    %1670 = vmatprep.subr.mxu0 0.0
    %1671 = vmatpush1.msra.mxu0 0.0
    %1672 = vmatprep.subr.mxu0 0.0
    %1673 = vmatpush1.msra.mxu0 0.0
    %1674 = vmatprep.subr.mxu0 0.0
    %1675 = vmatpush1.msra.mxu0 0.0
    %1676 = vmatprep.subr.mxu0 0.0
    %1677 = vmatpush1.msra.mxu0 0.0
    %1678 = vmatprep.mubr.f32.mxu0 0.0
    %1679 = vmatmul.mubr.f32.gmra.mrb[0].mxu0 %v1609
    %v1680 = vpop.f32.mrb[0].mxu0
    %v1681 = vadd.f32 0.0, %v1680
    %v1682 = vpop.f32.mrb[0].mxu0
    %1683 = vmatprep.mubr.f32.mxu0 0.0
    %1684 = vmatmul.mubr.f32.gmra.mrb[0].mxu0 %v1612
    %v1685 = vpop.f32.mrb[0].mxu0
    %v1686 = vadd.f32 0.0, %v1685
    %v1687 = vpop.f32.mrb[0].mxu0
    %1688 = vdwg.mxu0
    %1691 = vrot.lane.b32.xlu0 %v1681, 16
    %v1692 = vpop.permute.xlu0 %1691
    %1693 = vrot.lane.b32.xlu0 %v1686, 16
    %v1694 = vpop.permute.xlu0 %1693
    %v1697 = vsel %vm210, %v1477, %v1692
    %v1698 = vsel %vm210, %v1482, %v1694
    %v1700 = vsel %vm350, %v1697, 0
    %v1703 = vsel %vm350, %v1698, 0
    %1705 = vmatprep.subr.mxu0 0.0
    %1706 = vmatpush1.msra.mxu0 %v44
    %1707 = vmatprep.subr.mxu0 0.0
    %1708 = vmatpush1.msra.mxu0 %v45
    %1709 = vmatprep.subr.mxu0 0.0
    %1710 = vmatpush1.msra.mxu0 %v46
    %1711 = vmatprep.subr.mxu0 0.0
    %1712 = vmatpush1.msra.mxu0 %v47
    %1713 = vmatprep.subr.mxu0 0.0
    %1714 = vmatpush1.msra.mxu0 0.0
    %1715 = vmatprep.subr.mxu0 0.0
    %1716 = vmatpush1.msra.mxu0 0.0
    %1717 = vmatprep.subr.mxu0 0.0
    %1718 = vmatpush1.msra.mxu0 0.0
    %1719 = vmatprep.subr.mxu0 0.0
    %1720 = vmatpush1.msra.mxu0 0.0
    %1721 = vmatprep.subr.mxu0 0.0
    %1722 = vmatpush1.msra.mxu0 0.0
    %1723 = vmatprep.subr.mxu0 0.0
    %1724 = vmatpush1.msra.mxu0 0.0
    %1725 = vmatprep.subr.mxu0 0.0
    %1726 = vmatpush1.msra.mxu0 0.0
    %1727 = vmatprep.subr.mxu0 0.0
    %1728 = vmatpush1.msra.mxu0 0.0
    %1729 = vmatprep.subr.mxu0 0.0
    %1730 = vmatpush1.msra.mxu0 0.0
    %1731 = vmatprep.subr.mxu0 0.0
    %1732 = vmatpush1.msra.mxu0 0.0
    %1733 = vmatprep.subr.mxu0 0.0
    %1734 = vmatpush1.msra.mxu0 0.0
    %1735 = vmatprep.subr.mxu0 0.0
    %1736 = vmatpush1.msra.mxu0 0.0
    %1737 = vmatprep.subr.mxu0 0.0
    %1738 = vmatpush1.msra.mxu0 0.0
    %1739 = vmatprep.subr.mxu0 0.0
    %1740 = vmatpush1.msra.mxu0 0.0
    %1741 = vmatprep.subr.mxu0 0.0
    %1742 = vmatpush1.msra.mxu0 0.0
    %1743 = vmatprep.subr.mxu0 0.0
    %1744 = vmatpush1.msra.mxu0 0.0
    %1745 = vmatprep.subr.mxu0 0.0
    %1746 = vmatpush1.msra.mxu0 0.0
    %1747 = vmatprep.subr.mxu0 0.0
    %1748 = vmatpush1.msra.mxu0 0.0
    %1749 = vmatprep.subr.mxu0 0.0
    %1750 = vmatpush1.msra.mxu0 0.0
    %1751 = vmatprep.subr.mxu0 0.0
    %1752 = vmatpush1.msra.mxu0 0.0
    %1753 = vmatprep.subr.mxu0 0.0
    %1754 = vmatpush1.msra.mxu0 0.0
    %1755 = vmatprep.subr.mxu0 0.0
    %1756 = vmatpush1.msra.mxu0 0.0
    %1757 = vmatprep.subr.mxu0 0.0
    %1758 = vmatpush1.msra.mxu0 0.0
    %1759 = vmatprep.subr.mxu0 0.0
    %1760 = vmatpush1.msra.mxu0 0.0
    %1761 = vmatprep.subr.mxu0 0.0
    %1762 = vmatpush1.msra.mxu0 0.0
    %1763 = vmatprep.subr.mxu0 0.0
    %1764 = vmatpush1.msra.mxu0 0.0
    %1765 = vmatprep.subr.mxu0 0.0
    %1766 = vmatpush1.msra.mxu0 0.0
    %1767 = vmatprep.subr.mxu0 0.0
    %1768 = vmatpush1.msra.mxu0 0.0
    %1769 = vmatprep.mubr.f32.mxu0 0.0
    %1770 = vmatmul.mubr.f32.gmra.mrb[0].mxu0 %v1700
    %v1771 = vpop.f32.mrb[0].mxu0
    %v1772 = vadd.f32 %v851, %v1771
    %v1773 = vpop.f32.mrb[0].mxu0
    %1774 = vmatprep.mubr.f32.mxu0 0.0
    %1775 = vmatmul.mubr.f32.gmra.mrb[0].mxu0 %v1703
    %v1776 = vpop.f32.mrb[0].mxu0
    %v1777 = vadd.f32 %v851, %v1776
    %v1778 = vpop.f32.mrb[0].mxu0
    %1779 = vdwg.mxu0
    %v1780 = vadd.f32 %v1200, %v1772
    %v1781 = vadd.f32 %v1201, %v1777
    %v1782 = vsel %vm350, %v1780, 0.0
    %1783 = vadd.xlane.f32.xlu0 %v1782
    %v1784 = vpop.xlane.xlu0 %1783
    %v1785 = vsel %vm350, %v1781, 0.0
    %1786 = vadd.xlane.f32.xlu0 %v1785
    %v1787 = vpop.xlane.xlu0 %1786
    %v1788 = vmul.f32 %v1784, %v941
    %v1789 = vmul.f32 %v1787, %v941
    %v1790 = vsub.f32 %v1780, %v1788
    %v1791 = vsub.f32 %v1781, %v1789
    %v1792 = vmul.f32 %v1790, %v1790
    %v1793 = vmul.f32 %v1791, %v1791
    %v1794 = vsel %vm350, %v1792, 0.0
    %1795 = vadd.xlane.f32.xlu0 %v1794
    %v1796 = vpop.xlane.xlu0 %1795
    %v1797 = vsel %vm350, %v1793, 0.0
    %1798 = vadd.xlane.f32.xlu0 %v1797
    %v1799 = vpop.xlane.xlu0 %1798
    %v1800 = vmul.f32 %v1796, %v941
    %v1801 = vmul.f32 %v1799, %v941
    %v1802 = vadd.f32 %v1800, 1e-12
    %v1803 = vadd.f32 %v1801, 1e-12
    %v1804 = vrsqrt.pop %v1802
    %v1805 = vrsqrt.pop %v1803
    %v1806 = vmul.f32 %v1790, %v1804
    %v1807 = vmul.f32 %v1791, %v1805
    %v1808 = vmul.f32 %v1806, %v965
    %v1809 = vmul.f32 %v1807, %v965
    %v1810 = vadd.f32 %v1808, %v971
    %v1811 = vadd.f32 %v1809, %v971
    %v1813 = vsel %vm350, %v1810, 0
    %v1816 = vsel %vm350, %v1811, 0
    %1818 = vmatprep.subr.mxu0 0.0
    %1819 = vmatpush1.msra.mxu0 %v48
    %1820 = vmatprep.subr.mxu0 0.0
    %1821 = vmatpush1.msra.mxu0 %v49
    %1822 = vmatprep.subr.mxu0 0.0
    %1823 = vmatpush1.msra.mxu0 %v50
    %1824 = vmatprep.subr.mxu0 0.0
    %1825 = vmatpush1.msra.mxu0 %v51
    %1826 = vmatprep.subr.mxu0 0.0
    %1827 = vmatpush1.msra.mxu0 0.0
    %1828 = vmatprep.subr.mxu0 0.0
    %1829 = vmatpush1.msra.mxu0 0.0
    %1830 = vmatprep.subr.mxu0 0.0
    %1831 = vmatpush1.msra.mxu0 0.0
    %1832 = vmatprep.subr.mxu0 0.0
    %1833 = vmatpush1.msra.mxu0 0.0
    %1834 = vmatprep.subr.mxu0 0.0
    %1835 = vmatpush1.msra.mxu0 0.0
    %1836 = vmatprep.subr.mxu0 0.0
    %1837 = vmatpush1.msra.mxu0 0.0
    %1838 = vmatprep.subr.mxu0 0.0
    %1839 = vmatpush1.msra.mxu0 0.0
    %1840 = vmatprep.subr.mxu0 0.0
    %1841 = vmatpush1.msra.mxu0 0.0
    %1842 = vmatprep.subr.mxu0 0.0
    %1843 = vmatpush1.msra.mxu0 0.0
    %1844 = vmatprep.subr.mxu0 0.0
    %1845 = vmatpush1.msra.mxu0 0.0
    %1846 = vmatprep.subr.mxu0 0.0
    %1847 = vmatpush1.msra.mxu0 0.0
    %1848 = vmatprep.subr.mxu0 0.0
    %1849 = vmatpush1.msra.mxu0 0.0
    %1850 = vmatprep.subr.mxu0 0.0
    %1851 = vmatpush1.msra.mxu0 0.0
    %1852 = vmatprep.subr.mxu0 0.0
    %1853 = vmatpush1.msra.mxu0 0.0
    %1854 = vmatprep.subr.mxu0 0.0
    %1855 = vmatpush1.msra.mxu0 0.0
    %1856 = vmatprep.subr.mxu0 0.0
    %1857 = vmatpush1.msra.mxu0 0.0
    %1858 = vmatprep.subr.mxu0 0.0
    %1859 = vmatpush1.msra.mxu0 0.0
    %1860 = vmatprep.subr.mxu0 0.0
    %1861 = vmatpush1.msra.mxu0 0.0
    %1862 = vmatprep.subr.mxu0 0.0
    %1863 = vmatpush1.msra.mxu0 0.0
    %1864 = vmatprep.subr.mxu0 0.0
    %1865 = vmatpush1.msra.mxu0 0.0
    %1866 = vmatprep.subr.mxu0 0.0
    %1867 = vmatpush1.msra.mxu0 0.0
    %1868 = vmatprep.subr.mxu0 0.0
    %1869 = vmatpush1.msra.mxu0 0.0
    %1870 = vmatprep.subr.mxu0 0.0
    %1871 = vmatpush1.msra.mxu0 0.0
    %1872 = vmatprep.subr.mxu0 0.0
    %1873 = vmatpush1.msra.mxu0 0.0
    %1874 = vmatprep.subr.mxu0 0.0
    %1875 = vmatpush1.msra.mxu0 0.0
    %1876 = vmatprep.subr.mxu0 0.0
    %1877 = vmatpush1.msra.mxu0 0.0
    %1878 = vmatprep.subr.mxu0 0.0
    %1879 = vmatpush1.msra.mxu0 0.0
    %1880 = vmatprep.subr.mxu0 0.0
    %1881 = vmatpush1.msra.mxu0 0.0
    %1882 = vmatprep.mubr.f32.mxu0 0.0
    %1883 = vmatmul.mubr.f32.gmra.mrb[0].mxu0 %v1813
    %v1884 = vpop.f32.mrb[0].mxu0
    %v1885 = vadd.f32 %v977, %v1884
    %v1886 = vpop.f32.mrb[0].mxu0
    %1887 = vmatprep.mubr.f32.mxu0 0.0
    %1888 = vmatmul.mubr.f32.gmra.mrb[0].mxu0 %v1816
    %v1889 = vpop.f32.mrb[0].mxu0
    %v1890 = vadd.f32 %v977, %v1889
    %v1891 = vpop.f32.mrb[0].mxu0
    %1892 = vdwg.mxu0
    %v1893 = vmul.f32 %v1885, 0.5
    %v1894 = vmul.f32 %v1890, 0.5
    %v1895 = vmul.f32 %v1885, 0.044715
    %v1896 = vmul.f32 %v1890, 0.044715
    %v1897 = vmul.f32 %v1895, %v1885
    %v1898 = vmul.f32 %v1896, %v1890
    %v1899 = vmul.f32 %v1897, %v1885
    %v1900 = vmul.f32 %v1898, %v1890
    %v1901 = vadd.f32 %v1885, %v1899
    %v1902 = vadd.f32 %v1890, %v1900
    %v1903 = vmul.f32 %v1901, 0.7978846
    %v1904 = vmul.f32 %v1902, 0.7978846
    %v1905 = vtanh.pop %v1903
    %v1906 = vtanh.pop %v1904
    %v1907 = vadd.f32 %v1905, 1.0
    %v1908 = vadd.f32 %v1906, 1.0
    %v1909 = vmul.f32 %v1893, %v1907
    %v1910 = vmul.f32 %v1894, %v1908
    %v1912 = vsel %vm110, %v1909, 0
    %v1915 = vsel %vm110, %v1910, 0
    %1917 = vmatprep.subr.mxu0 0.0
    %1918 = vmatpush1.msra.mxu0 %v52
    %1919 = vmatprep.subr.mxu0 0.0
    %1920 = vmatpush1.msra.mxu0 %v53
    %1921 = vmatprep.subr.mxu0 0.0
    %1922 = vmatpush1.msra.mxu0 %v54
    %1923 = vmatprep.subr.mxu0 0.0
    %1924 = vmatpush1.msra.mxu0 %v55
    %1925 = vmatprep.subr.mxu0 0.0
    %1926 = vmatpush1.msra.mxu0 %v56
    %1927 = vmatprep.subr.mxu0 0.0
    %1928 = vmatpush1.msra.mxu0 %v57
    %1929 = vmatprep.subr.mxu0 0.0
    %1930 = vmatpush1.msra.mxu0 %v58
    %1931 = vmatprep.subr.mxu0 0.0
    %1932 = vmatpush1.msra.mxu0 %v59
    %1933 = vmatprep.subr.mxu0 0.0
    %1934 = vmatpush1.msra.mxu0 0.0
    %1935 = vmatprep.subr.mxu0 0.0
    %1936 = vmatpush1.msra.mxu0 0.0
    %1937 = vmatprep.subr.mxu0 0.0
    %1938 = vmatpush1.msra.mxu0 0.0
    %1939 = vmatprep.subr.mxu0 0.0
    %1940 = vmatpush1.msra.mxu0 0.0
    %1941 = vmatprep.subr.mxu0 0.0
    %1942 = vmatpush1.msra.mxu0 0.0
    %1943 = vmatprep.subr.mxu0 0.0
    %1944 = vmatpush1.msra.mxu0 0.0
    %1945 = vmatprep.subr.mxu0 0.0
    %1946 = vmatpush1.msra.mxu0 0.0
    %1947 = vmatprep.subr.mxu0 0.0
    %1948 = vmatpush1.msra.mxu0 0.0
    %1949 = vmatprep.subr.mxu0 0.0
    %1950 = vmatpush1.msra.mxu0 0.0
    %1951 = vmatprep.subr.mxu0 0.0
    %1952 = vmatpush1.msra.mxu0 0.0
    %1953 = vmatprep.subr.mxu0 0.0
    %1954 = vmatpush1.msra.mxu0 0.0
    %1955 = vmatprep.subr.mxu0 0.0
    %1956 = vmatpush1.msra.mxu0 0.0
    %1957 = vmatprep.subr.mxu0 0.0
    %1958 = vmatpush1.msra.mxu0 0.0
    %1959 = vmatprep.subr.mxu0 0.0
    %1960 = vmatpush1.msra.mxu0 0.0
    %1961 = vmatprep.subr.mxu0 0.0
    %1962 = vmatpush1.msra.mxu0 0.0
    %1963 = vmatprep.subr.mxu0 0.0
    %1964 = vmatpush1.msra.mxu0 0.0
    %1965 = vmatprep.subr.mxu0 0.0
    %1966 = vmatpush1.msra.mxu0 0.0
    %1967 = vmatprep.subr.mxu0 0.0
    %1968 = vmatpush1.msra.mxu0 0.0
    %1969 = vmatprep.subr.mxu0 0.0
    %1970 = vmatpush1.msra.mxu0 0.0
    %1971 = vmatprep.subr.mxu0 0.0
    %1972 = vmatpush1.msra.mxu0 0.0
    %1973 = vmatprep.subr.mxu0 0.0
    %1974 = vmatpush1.msra.mxu0 0.0
    %1975 = vmatprep.subr.mxu0 0.0
    %1976 = vmatpush1.msra.mxu0 0.0
    %1977 = vmatprep.subr.mxu0 0.0
    %1978 = vmatpush1.msra.mxu0 0.0
    %1979 = vmatprep.subr.mxu0 0.0
    %1980 = vmatpush1.msra.mxu0 0.0
    %1981 = vmatprep.mubr.f32.mxu0 0.0
    %1982 = vmatmul.mubr.f32.gmra.mrb[0].mxu0 %v1912
    %v1983 = vpop.f32.mrb[0].mxu0
    %v1984 = vadd.f32 %v1080, %v1983
    %v1985 = vpop.f32.mrb[0].mxu0
    %1986 = vmatprep.mubr.f32.mxu0 0.0
    %1987 = vmatmul.mubr.f32.gmra.mrb[0].mxu0 %v1915
    %v1988 = vpop.f32.mrb[0].mxu0
    %v1989 = vadd.f32 %v1080, %v1988
    %v1990 = vpop.f32.mrb[0].mxu0
    %1991 = vdwg.mxu0
    %v1992 = vadd.f32 %v1810, %v1984
    %v1993 = vadd.f32 %v1811, %v1989
    %v1994 = vsel %vm350, %v1992, 0.0
    %1995 = vadd.xlane.f32.xlu0 %v1994
    %v1996 = vpop.xlane.xlu0 %1995
    %v1997 = vsel %vm350, %v1993, 0.0
    %1998 = vadd.xlane.f32.xlu0 %v1997
    %v1999 = vpop.xlane.xlu0 %1998
    %v2000 = vmul.f32 %v1996, %v941
    %v2001 = vmul.f32 %v1999, %v941
    %v2002 = vsub.f32 %v1992, %v2000
    %v2003 = vsub.f32 %v1993, %v2001
    %v2004 = vmul.f32 %v2002, %v2002
    %v2005 = vmul.f32 %v2003, %v2003
    %v2006 = vsel %vm350, %v2004, 0.0
    %2007 = vadd.xlane.f32.xlu0 %v2006
    %v2008 = vpop.xlane.xlu0 %2007
    %v2009 = vsel %vm350, %v2005, 0.0
    %2010 = vadd.xlane.f32.xlu0 %v2009
    %v2011 = vpop.xlane.xlu0 %2010
    %v2012 = vmul.f32 %v2008, %v941
    %v2013 = vmul.f32 %v2011, %v941
    %v2014 = vadd.f32 %v2012, 1e-12
    %v2015 = vadd.f32 %v2013, 1e-12
    %v2016 = vrsqrt.pop %v2014
    %v2017 = vrsqrt.pop %v2015
    %v2018 = vmul.f32 %v2002, %v2016
    %v2019 = vmul.f32 %v2003, %v2017
    %v2020 = vmul.f32 %v2018, %v1193
    %v2021 = vmul.f32 %v2019, %v1193
    %v2022 = vadd.f32 %v2020, %v1199
    %v2023 = vadd.f32 %v2021, %v1199
    %v2024 = vld [vmem:[%s3] sm:$0x1]
    %v2026 = vlaneseq
    %v2027 = vshrl.u32 %v2026, 7
    %v2028 = vsub.s32 0, %v2027
    %v2029 = vrot.slane %v2024, %v2028
    %v2031 = vmul.f32 %v89, %v2029
    %vm2032 = vcmask 123904
    %v2033 = vsel %vm2032, %v2031, 0.0
    %2034 = vadd.xlane.f32.xlu0 %v2033
    %v2035 = vpop.xlane.xlu0 %2034
    %v2037 = vsel %vm210, %v2031, 0
    %2039 = vmatprep.subr.mxu0 0.0
    %2040 = vmatpush1.msra.mxu0 %v2022
    %2041 = vmatprep.subr.mxu0 0.0
    %2042 = vmatpush1.msra.mxu0 %v2023
    %2043 = vmatprep.subr.mxu0 0.0
    %2044 = vmatpush1.msra.mxu0 0.0
    %2045 = vmatprep.subr.mxu0 0.0
    %2046 = vmatpush1.msra.mxu0 0.0
    %2047 = vmatprep.subr.mxu0 0.0
    %2048 = vmatpush1.msra.mxu0 0.0
    %2049 = vmatprep.subr.mxu0 0.0
    %2050 = vmatpush1.msra.mxu0 0.0
    %2051 = vmatprep.subr.mxu0 0.0
    %2052 = vmatpush1.msra.mxu0 0.0
    %2053 = vmatprep.subr.mxu0 0.0
    %2054 = vmatpush1.msra.mxu0 0.0
    %2055 = vmatprep.subr.mxu0 0.0
    %2056 = vmatpush1.msra.mxu0 0.0
    %2057 = vmatprep.subr.mxu0 0.0
    %2058 = vmatpush1.msra.mxu0 0.0
    %2059 = vmatprep.subr.mxu0 0.0
    %2060 = vmatpush1.msra.mxu0 0.0
    %2061 = vmatprep.subr.mxu0 0.0
    %2062 = vmatpush1.msra.mxu0 0.0
    %2063 = vmatprep.subr.mxu0 0.0
    %2064 = vmatpush1.msra.mxu0 0.0
    %2065 = vmatprep.subr.mxu0 0.0
    %2066 = vmatpush1.msra.mxu0 0.0
    %2067 = vmatprep.subr.mxu0 0.0
    %2068 = vmatpush1.msra.mxu0 0.0
    %2069 = vmatprep.subr.mxu0 0.0
    %2070 = vmatpush1.msra.mxu0 0.0
    %2071 = vmatprep.subr.mxu0 0.0
    %2072 = vmatpush1.msra.mxu0 0.0
    %2073 = vmatprep.subr.mxu0 0.0
    %2074 = vmatpush1.msra.mxu0 0.0
    %2075 = vmatprep.subr.mxu0 0.0
    %2076 = vmatpush1.msra.mxu0 0.0
    %2077 = vmatprep.subr.mxu0 0.0
    %2078 = vmatpush1.msra.mxu0 0.0
    %2079 = vmatprep.subr.mxu0 0.0
    %2080 = vmatpush1.msra.mxu0 0.0
    %2081 = vmatprep.subr.mxu0 0.0
    %2082 = vmatpush1.msra.mxu0 0.0
    %2083 = vmatprep.subr.mxu0 0.0
    %2084 = vmatpush1.msra.mxu0 0.0
    %2085 = vmatprep.subr.mxu0 0.0
    %2086 = vmatpush1.msra.mxu0 0.0
    %2087 = vmatprep.subr.mxu0 0.0
    %2088 = vmatpush1.msra.mxu0 0.0
    %2089 = vmatprep.subr.mxu0 0.0
    %2090 = vmatpush1.msra.mxu0 0.0
    %2091 = vmatprep.subr.mxu0 0.0
    %2092 = vmatpush1.msra.mxu0 0.0
    %2093 = vmatprep.subr.mxu0 0.0
    %2094 = vmatpush1.msra.mxu0 0.0
    %2095 = vmatprep.subr.mxu0 0.0
    %2096 = vmatpush1.msra.mxu0 0.0
    %2097 = vmatprep.subr.mxu0 0.0
    %2098 = vmatpush1.msra.mxu0 0.0
    %2099 = vmatprep.subr.mxu0 0.0
    %2100 = vmatpush1.msra.mxu0 0.0
    %2101 = vmatprep.subr.mxu0 0.0
    %2102 = vmatpush1.msra.mxu0 0.0
    %2103 = vmatprep.mubr.f32.mxu0 0.0
    %2104 = vmatmul.mubr.f32.gmra.mrb[0].mxu0 %v2037
    %v2105 = vpop.f32.mrb[0].mxu0
    %v2106 = vadd.f32 0.0, %v2105
    %v2107 = vpop.f32.mrb[0].mxu0
    %2108 = vdwg.mxu0
    %v2109 = vrcp.pop %v2035
    %v2110 = vmul.f32 %v2106, %v2109
    %v2111 = vlaneseq
    %v2112 = vshrl.u32 %v2111, 7
    %v2113 = vsub.s32 0, %v2112
    %v2114 = vrot.slane %v88, %v2113
    %v2116 = vsel %vm350, %v2110, 0
    %2118 = vmatprep.subr.mxu0 0.0
    %2119 = vmatpush1.msra.mxu0 %v60
    %2120 = vmatprep.subr.mxu0 0.0
    %2121 = vmatpush1.msra.mxu0 %v61
    %2122 = vmatprep.subr.mxu0 0.0
    %2123 = vmatpush1.msra.mxu0 %v62
    %2124 = vmatprep.subr.mxu0 0.0
    %2125 = vmatpush1.msra.mxu0 %v63
    %2126 = vmatprep.subr.mxu0 0.0
    %2127 = vmatpush1.msra.mxu0 0.0
    %2128 = vmatprep.subr.mxu0 0.0
    %2129 = vmatpush1.msra.mxu0 0.0
    %2130 = vmatprep.subr.mxu0 0.0
    %2131 = vmatpush1.msra.mxu0 0.0
    %2132 = vmatprep.subr.mxu0 0.0
    %2133 = vmatpush1.msra.mxu0 0.0
    %2134 = vmatprep.subr.mxu0 0.0
    %2135 = vmatpush1.msra.mxu0 0.0
    %2136 = vmatprep.subr.mxu0 0.0
    %2137 = vmatpush1.msra.mxu0 0.0
    %2138 = vmatprep.subr.mxu0 0.0
    %2139 = vmatpush1.msra.mxu0 0.0
    %2140 = vmatprep.subr.mxu0 0.0
    %2141 = vmatpush1.msra.mxu0 0.0
    %2142 = vmatprep.subr.mxu0 0.0
    %2143 = vmatpush1.msra.mxu0 0.0
    %2144 = vmatprep.subr.mxu0 0.0
    %2145 = vmatpush1.msra.mxu0 0.0
    %2146 = vmatprep.subr.mxu0 0.0
    %2147 = vmatpush1.msra.mxu0 0.0
    %2148 = vmatprep.subr.mxu0 0.0
    %2149 = vmatpush1.msra.mxu0 0.0
    %2150 = vmatprep.subr.mxu0 0.0
    %2151 = vmatpush1.msra.mxu0 0.0
    %2152 = vmatprep.subr.mxu0 0.0
    %2153 = vmatpush1.msra.mxu0 0.0
    %2154 = vmatprep.subr.mxu0 0.0
    %2155 = vmatpush1.msra.mxu0 0.0
    %2156 = vmatprep.subr.mxu0 0.0
    %2157 = vmatpush1.msra.mxu0 0.0
    %2158 = vmatprep.subr.mxu0 0.0
    %2159 = vmatpush1.msra.mxu0 0.0
    %2160 = vmatprep.subr.mxu0 0.0
    %2161 = vmatpush1.msra.mxu0 0.0
    %2162 = vmatprep.subr.mxu0 0.0
    %2163 = vmatpush1.msra.mxu0 0.0
    %2164 = vmatprep.subr.mxu0 0.0
    %2165 = vmatpush1.msra.mxu0 0.0
    %2166 = vmatprep.subr.mxu0 0.0
    %2167 = vmatpush1.msra.mxu0 0.0
    %2168 = vmatprep.subr.mxu0 0.0
    %2169 = vmatpush1.msra.mxu0 0.0
    %2170 = vmatprep.subr.mxu0 0.0
    %2171 = vmatpush1.msra.mxu0 0.0
    %2172 = vmatprep.subr.mxu0 0.0
    %2173 = vmatpush1.msra.mxu0 0.0
    %2174 = vmatprep.subr.mxu0 0.0
    %2175 = vmatpush1.msra.mxu0 0.0
    %2176 = vmatprep.subr.mxu0 0.0
    %2177 = vmatpush1.msra.mxu0 0.0
    %2178 = vmatprep.subr.mxu0 0.0
    %2179 = vmatpush1.msra.mxu0 0.0
    %2180 = vmatprep.subr.mxu0 0.0
    %2181 = vmatpush1.msra.mxu0 0.0
    %2182 = vmatprep.mubr.f32.mxu0 0.0
    %2183 = vmatmul.mubr.f32.gmra.mrb[0].mxu0 %v2116
    %v2184 = vpop.f32.mrb[0].mxu0
    %v2185 = vadd.f32 %v2114, %v2184
    %v2186 = vpop.f32.mrb[0].mxu0
    %2187 = vdwg.mxu0
    %2188 = vst [vmem:[#allocation5] sm:$0x3] %v2185
    // Predicated region
    $region30: #{beike_forward.1} parent=1 // pred_check
      _
    $region31: #{beike_forward.1} parent=1 // pred_check_branch
      %2190 = sbr.rel (0) target = $region33
    $region32: #{beike_forward.1} parent=1 // pred_region
      %s2192 = ssub.s32 32, 32
      %2193 = vsyncadd [#allocation4], %s2192
      %s2195 = sshll.u32 [#allocation5], 4
      %s2196 = int_to_ptr.vmem [resolvable:$true] %s2195
      %2198 = dma.vmem_to_hbm [thread:$0]  %s2196, 32, %s6, [#allocation4]
    $region33: #{beike_forward.1} parent=1 // pred_fallthru
      _
    // Predicated region
    $region34: #{beike_forward.1} parent=1 // pred_check
      _
    $region35: #{beike_forward.1} parent=1 // pred_check_branch
      %2200 = sbr.rel (0) target = $region37
    $region36: #{beike_forward.1} parent=1 // pred_region
      %2201 = dma.done [#allocation4], 32
    $region37: #{beike_forward.1} parent=1 // pred_fallthru
      _
    %2202 = vsyncpa [#allocation3], 1
    %2203 = vsyncpa [#allocation4], 1

</llo_original>
